<compile_context>
chip_gen: v7x
topology: tpu7x:2x2x1
jax: 0.10.0
libtpu: 0.0.40
codegen_flags: <defaults>
</compile_context>

<pallas_src>
import jax
import jax.numpy as jnp
from jax import lax
from jax.experimental import pallas as pl
from jax.experimental.pallas import tpu as pltpu

CPAD = 128          # every channel dim padded to the TPU lane width
NEG_SLOPE = 0.2     # LeakyReLU(0.2) used by the module
TL = 128            # output-time rows per grid tile


# ---------------------------------------------------------------------------
# Pallas kernels
# ---------------------------------------------------------------------------
def make_conv_block_kernel(K, S):
    """Fused Conv1d (stride S, VALID) + bias + LeakyReLU(0.2) + weighted
    residual skip for one DW_Module layer, on one TL-row output tile.

      xwin_ref : (1, S, TL+Hb, CPAD)  phase-split input window for this tile
      skip_ref : (1, TL, CPAD)        residual slice (channels >= min_c zeroed)
      w_ref    : (K, CPAD, CPAD)      conv taps, channel-padded   (resident)
      b_ref    : (1, CPAD)            bias, channel-padded        (resident)
      sc_ref   : (2, CPAD)            row0 = res_weight, row1 = layr_weight
      out_ref  : (1, TL, CPAD)
    """
    def kernel(xwin_ref, skip_ref, w_ref, b_ref, sc_ref, out_ref):
        tl = out_ref.shape[1]
        acc = jnp.zeros((tl, w_ref.shape[2]), jnp.float32)
        # In-kernel "im2col": one MXU matmul per kernel tap, accumulated in
        # registers; avoids duplicating the activation K times in HBM.
        for k in range(K):                       # K is small & static -> unroll
            o, p = k // S, k % S
            xk = xwin_ref[0, p, o:o + tl, :]                     # (TL, CPAD)
            acc = acc + jnp.dot(xk, w_ref[k],
                                preferred_element_type=jnp.float32)
        y = acc + b_ref[...]
        res = jnp.where(y >= 0.0, y, NEG_SLOPE * y)              # LeakyReLU(0.2)
        out_ref[0] = sc_ref[0:1, :] * res + sc_ref[1:2, :] * skip_ref[0]
    return kernel


def make_mean_kernel(length):
    """pred[b] = mean over time of channel 0 of the final activation."""
    inv = 1.0 / float(length)

    def kernel(x_ref, o_ref):
        x = x_ref[0]                                             # (L, CPAD)
        lane = lax.broadcasted_iota(jnp.int32, (1, CPAD), 1)
        s = jnp.sum(jnp.where(lane == 0, x, 0.0))                # channel 0 only
        o_ref[...] = jnp.broadcast_to(s * inv, (1, 1, CPAD)).astype(jnp.float32)
    return kernel


# ---------------------------------------------------------------------------
# Layer / module wrappers
# ---------------------------------------------------------------------------
def _cdiv(a, b):
    return -(-a // b)


def conv_layer_apply(x, length, layer):
    """One DW_Module conv layer.  x: (B, length, CPAD) channels-last with real
    data in channels [0, cin).  Returns ((B, L_out, CPAD), L_out)."""
    B = x.shape[0]
    K, S = layer['K'], layer['S']
    cin, cout = layer['cin'], layer['cout']

    x = x[:, :length, :]
    if length < K:                                # torch: right-pad with zeros
        x = jnp.pad(x, ((0, 0), (0, K - length), (0, 0)))
        length = K

    l_out = (length - K) // S + 1
    left = (length - l_out) // 2
    min_c = min(cin, cout)
    n_t = _cdiv(l_out, TL)
    hb = _cdiv(K, S) - 1                          # halo blocks per tile
    winb = TL + hb
    n = B * n_t

    # Halo-only window staging (~1 + hb/TL of the activation, vs K-fold for a
    # full im2col), phase-split over the stride so the kernel only needs
    # contiguous static slices.
    l_need = n_t * TL * S + hb * S
    xp = jnp.pad(x, ((0, 0), (0, l_need - length), (0, 0)))
    gidx = (jnp.arange(n_t)[:, None, None] * (TL * S)
            + jnp.arange(S)[None, :, None]
            + jnp.arange(winb)[None, None, :] * S)               # (n_t, S, winb)
    x_win = xp[:, gidx, :].reshape(n, S, winb, CPAD)

    # Residual slice; channels >= min_c zeroed (module only adds to :min_c).
    skip = x[:, left:left + l_out, :min_c]
    skip = jnp.pad(skip, ((0, 0), (0, n_t * TL - l_out), (0, CPAD - min_c)))
    skip = skip.reshape(n, TL, CPAD)

    out = pl.pallas_call(
        make_conv_block_kernel(K, S),
        out_shape=jax.ShapeDtypeStruct((n, TL, CPAD), jnp.float32),
        grid=(n,),
        in_specs=[
            pl.BlockSpec((1, S, winb, CPAD), lambda i: (i, 0, 0, 0)),
            pl.BlockSpec((1, TL, CPAD), lambda i: (i, 0, 0)),
            pl.BlockSpec((K, CPAD, CPAD), lambda i: (0, 0, 0)),   # resident
            pl.BlockSpec((1, CPAD), lambda i: (0, 0)),            # resident
            pl.BlockSpec((2, CPAD), lambda i: (0, 0)),            # resident
        ],
        out_specs=pl.BlockSpec((1, TL, CPAD), lambda i: (i, 0, 0)),
        compiler_params=pltpu.CompilerParams(
            dimension_semantics=("parallel",)),
    )(x_win, skip, layer['w'], layer['b'], layer['sc'])

    out = out.reshape(B, n_t * TL, CPAD)[:, :l_out, :]
    return out, l_out


def mean_over_time(x, length):
    """x: (B, length, CPAD) -> (B,) mean over time of channel 0."""
    B = x.shape[0]
    out = pl.pallas_call(
        make_mean_kernel(length),
        out_shape=jax.ShapeDtypeStruct((B, 1, CPAD), jnp.float32),
        grid=(B,),
        in_specs=[pl.BlockSpec((1, length, CPAD), lambda b: (b, 0, 0))],
        out_specs=pl.BlockSpec((1, 1, CPAD), lambda b: (b, 0, 0)),
        compiler_params=pltpu.CompilerParams(
            dimension_semantics=("parallel",)),
    )(x)
    return out[:, 0, 0]


def avg_pool1d(a, k=4, s=2):
    # JAX glue: F.avg_pool1d(kernel=4, stride=2) on the raw 1-channel audio
    # between discriminators (tiny relative to the conv stacks).
    t = a.shape[1]
    t_out = (t - k) // s + 1
    idx = jnp.arange(t_out)[:, None] * s + jnp.arange(k)[None, :]
    return a[:, idx].mean(axis=-1)


def dw_forward(audio, modules):
    """audio: (B, T) float32 — same input DW.forward sees pre-unsqueeze."""
    B = audio.shape[0]
    a = audio.astype(jnp.float32)
    preds = []
    for mod in modules:
        length = a.shape[1]
        # channels-last, lane-padded activation; channel 0 = audio (unsqueeze)
        x = jnp.zeros((B, length, CPAD), jnp.float32).at[:, :, 0].set(a)
        for layer in mod['layers']:
            x, length = conv_layer_apply(x, length, layer)
        preds.append(mean_over_time(x, length))
        a = avg_pool1d(a)                         # next discriminator's input
    return jnp.stack(preds, axis=1).sum(axis=1)


# ---------------------------------------------------------------------------
# Deterministic parameter init (mirrors DW.__init__ / DW_Module.__init__)
# ---------------------------------------------------------------------------
def init_dw_params(key, n_discriminators, kernel_sizes, strides,
                   n_channels, group_sizes):
    assert n_channels[-1] == 1 and group_sizes[-1] == 1
    k = key

    def nxt():
        nonlocal k
        k, sub = jax.random.split(k)
        return sub

    modules = []
    for _ in range(n_discriminators):
        layers = []
        cin = 1
        for K, S, cout, G in zip(kernel_sizes, strides, n_channels, group_sizes):
            assert cin % G == 0 and cout % G == 0
            # weight_norm at construction is an identity reparametrization
            # (g is initialized to ||v||), so the effective weight is w_t.
            w_t = 0.2 * jax.random.normal(nxt(), (cout, cin // G, K), jnp.float32)
            b_t = 0.1 * jax.random.normal(nxt(), (cout,), jnp.float32)
            # grouped conv -> dense block-diagonal weight, channel-padded to
            # CPAD lanes, in (K, Cin, Cout) matmul layout.
            # TODO(synk): for very large group counts keep true grouping
            # instead of block-diagonal expansion.
            co_g, ci_g = cout // G, cin // G
            w_dense = jnp.zeros((cout, cin, K), jnp.float32)
            for gi in range(G):
                w_dense = w_dense.at[gi * co_g:(gi + 1) * co_g,
                                     gi * ci_g:(gi + 1) * ci_g, :].set(
                    w_t[gi * co_g:(gi + 1) * co_g])
            w_k = jnp.zeros((K, CPAD, CPAD), jnp.float32)
            w_k = w_k.at[:, :cin, :cout].set(jnp.transpose(w_dense, (2, 1, 0)))
            b_k = jnp.zeros((1, CPAD), jnp.float32).at[0, :cout].set(b_t)
            layers.append(dict(K=K, S=S, G=G, cin=cin, cout=cout,
                               w_t=w_t, b_t=b_t, w=w_k, b=b_k))
            cin = cout
        res_w = jax.random.uniform(nxt(), (len(kernel_sizes),)) * 0.1 + 0.01
        layr_w = jnp.ones((len(kernel_sizes),), jnp.float32)
        for i, layer in enumerate(layers):
            layer['sc'] = jnp.stack(
                [jnp.full((CPAD,), res_w[i], jnp.float32),
                 jnp.full((CPAD,), layr_w[i], jnp.float32)])
        modules.append(dict(layers=layers, res_w=res_w, layr_w=layr_w))
    return modules


# ---------------------------------------------------------------------------
# Pure-JAX reference (mirrors the PyTorch forward exactly)
# ---------------------------------------------------------------------------
def dw_forward_reference(audio, modules):
    dn = ('NCH', 'OIH', 'NCH')
    a = audio[:, None, :].astype(jnp.float32)          # (B, 1, T)
    preds = []
    for mod in modules:
        x = a
        for i, layer in enumerate(mod['layers']):
            K, S, G = layer['K'], layer['S'], layer['G']
            if x.shape[2] < K:
                x = jnp.pad(x, ((0, 0), (0, 0), (0, K - x.shape[2])))
            res = lax.conv_general_dilated(x, layer['w_t'], (S,), 'VALID',
                                           dimension_numbers=dn,
                                           feature_group_count=G)
            res = res + layer['b_t'][None, :, None]
            res = jnp.where(res >= 0, res, NEG_SLOPE * res)
            l_in, l_out = x.shape[2], res.shape[2]
            left = (l_in - l_out) // 2
            right = l_in - l_out - left
            min_c = min(res.shape[1], x.shape[1])
            skip = x[:, :min_c, left:l_in - right]
            new = mod['res_w'][i] * res
            new = new.at[:, :min_c, :].add(mod['layr_w'][i] * skip)
            x = new
        preds.append(jnp.squeeze(x, axis=1).mean(axis=1))
        # F.avg_pool1d(kernel=4, stride=2)
        t = a.shape[2]
        t_out = (t - 4) // 2 + 1
        idx = jnp.arange(t_out)[:, None] * 2 + jnp.arange(4)[None, :]
        a = a[:, :, idx].mean(axis=-1)
    return jnp.stack(preds, axis=1).sum(axis=1)


# ---------------------------------------------------------------------------
if __name__ == "__main__":
    # Small DW configuration (same structure/constraints as the module:
    # n_channels[-1] == 1, group_sizes[-1] == 1, grouped middle conv).
    kernel_sizes = [7, 5, 3]
    strides = [1, 2, 1]
    n_channels = [8, 16, 1]
    group_sizes = [1, 2, 1]
    n_discriminators = 2

    key = jax.random.PRNGKey(0)
    k_in, k_par = jax.random.split(key)
    B, T = 2, 193
    audio = jax.random.normal(k_in, (B, T), jnp.float32)

    modules = init_dw_params(k_par, n_discriminators, kernel_sizes, strides,
                             n_channels, group_sizes)

    pred = jax.block_until_ready(dw_forward(audio, modules))
    ref = jax.block_until_ready(dw_forward_reference(audio, modules))

    assert pred.shape == ref.shape == (B,), (pred.shape, ref.shape)
    assert jnp.allclose(pred, ref, rtol=2e-3, atol=2e-3), (pred, ref)
    print("KERNEL_OK")
</pallas_src>

<mosaic_0001>
module attributes {stable_mosaic.version = 11 : i64} {
  func.func @kernel(%arg0: i32, %arg1: memref<1x1x134x128xf32, #tpu.memory_space<vmem>>, %arg2: memref<1x128x128xf32, #tpu.memory_space<vmem>>, %arg3: memref<7x128x128xf32, #tpu.memory_space<vmem>>, %arg4: memref<1x128xf32, #tpu.memory_space<vmem>>, %arg5: memref<2x128xf32, #tpu.memory_space<vmem>>, %arg6: memref<1x128x128xf32, #tpu.memory_space<vmem>>) attributes {dimension_semantics = [#tpu.dimension_semantics<parallel>], iteration_bounds = array<i64: 4>, scalar_prefetch = 0 : i64, scratch_operands = 0 : i64, tpu.core_type = #tpu.core_type<tc>, window_params = [{transform_indices = @transform_0, window_bounds = array<i64: 1, 1, 134, 128>}, {transform_indices = @transform_1, window_bounds = array<i64: 1, 128, 128>}, {pipeline_mode = #tpu.pipeline_mode<synchronous>, transform_indices = @transform_2, window_bounds = array<i64: 7, 128, 128>}, {pipeline_mode = #tpu.pipeline_mode<synchronous>, transform_indices = @transform_3, window_bounds = array<i64: 1, 128>}, {pipeline_mode = #tpu.pipeline_mode<synchronous>, transform_indices = @transform_4, window_bounds = array<i64: 2, 128>}, {transform_indices = @transform_5, window_bounds = array<i64: 1, 128, 128>}]} {
    %cst = arith.constant 0.000000e+00 : f32
    %0 = vector.broadcast %cst : f32 to vector<128x128xf32>
    %c0 = arith.constant 0 : index
    %c0_0 = arith.constant 0 : index
    %c0_1 = arith.constant 0 : index
    %c0_2 = arith.constant 0 : index
    %1 = vector.load %arg1[%c0, %c0_0, %c0_1, %c0_2] : memref<1x1x134x128xf32, #tpu.memory_space<vmem>>, vector<1x1x128x128xf32>
    %2 = vector.shape_cast %1 : vector<1x1x128x128xf32> to vector<128x128xf32>
    %c0_3 = arith.constant 0 : index
    %c0_4 = arith.constant 0 : index
    %c0_5 = arith.constant 0 : index
    %3 = vector.load %arg3[%c0_3, %c0_4, %c0_5] : memref<7x128x128xf32, #tpu.memory_space<vmem>>, vector<1x128x128xf32>
    %4 = vector.shape_cast %3 : vector<1x128x128xf32> to vector<128x128xf32>
    %cst_6 = arith.constant dense<0.000000e+00> : vector<128x128xf32>
    %5 = tpu.matmul %2, %4, %cst_6 {dimension_numbers = #tpu.dot_dimension_numbers<[1], [0], [0], [1], [0, 0, 1, 1], [], []>} : vector<128x128xf32>, vector<128x128xf32>, vector<128x128xf32> -> vector<128x128xf32>
    %6 = arith.addf %0, %5 : vector<128x128xf32>
    %c0_7 = arith.constant 0 : index
    %c0_8 = arith.constant 0 : index
    %c1 = arith.constant 1 : index
    %c0_9 = arith.constant 0 : index
    %7 = vector.load %arg1[%c0_7, %c0_8, %c1, %c0_9] : memref<1x1x134x128xf32, #tpu.memory_space<vmem>>, vector<1x1x128x128xf32>
    %8 = vector.shape_cast %7 : vector<1x1x128x128xf32> to vector<128x128xf32>
    %c1_10 = arith.constant 1 : index
    %c0_11 = arith.constant 0 : index
    %c0_12 = arith.constant 0 : index
    %9 = vector.load %arg3[%c1_10, %c0_11, %c0_12] : memref<7x128x128xf32, #tpu.memory_space<vmem>>, vector<1x128x128xf32>
    %10 = vector.shape_cast %9 : vector<1x128x128xf32> to vector<128x128xf32>
    %cst_13 = arith.constant dense<0.000000e+00> : vector<128x128xf32>
    %11 = tpu.matmul %8, %10, %cst_13 {dimension_numbers = #tpu.dot_dimension_numbers<[1], [0], [0], [1], [0, 0, 1, 1], [], []>} : vector<128x128xf32>, vector<128x128xf32>, vector<128x128xf32> -> vector<128x128xf32>
    %12 = arith.addf %6, %11 : vector<128x128xf32>
    %c0_14 = arith.constant 0 : index
    %c0_15 = arith.constant 0 : index
    %c2 = arith.constant 2 : index
    %c0_16 = arith.constant 0 : index
    %13 = vector.load %arg1[%c0_14, %c0_15, %c2, %c0_16] : memref<1x1x134x128xf32, #tpu.memory_space<vmem>>, vector<1x1x128x128xf32>
    %14 = vector.shape_cast %13 : vector<1x1x128x128xf32> to vector<128x128xf32>
    %c2_17 = arith.constant 2 : index
    %c0_18 = arith.constant 0 : index
    %c0_19 = arith.constant 0 : index
    %15 = vector.load %arg3[%c2_17, %c0_18, %c0_19] : memref<7x128x128xf32, #tpu.memory_space<vmem>>, vector<1x128x128xf32>
    %16 = vector.shape_cast %15 : vector<1x128x128xf32> to vector<128x128xf32>
    %cst_20 = arith.constant dense<0.000000e+00> : vector<128x128xf32>
    %17 = tpu.matmul %14, %16, %cst_20 {dimension_numbers = #tpu.dot_dimension_numbers<[1], [0], [0], [1], [0, 0, 1, 1], [], []>} : vector<128x128xf32>, vector<128x128xf32>, vector<128x128xf32> -> vector<128x128xf32>
    %18 = arith.addf %12, %17 : vector<128x128xf32>
    %c0_21 = arith.constant 0 : index
    %c0_22 = arith.constant 0 : index
    %c3 = arith.constant 3 : index
    %c0_23 = arith.constant 0 : index
    %19 = vector.load %arg1[%c0_21, %c0_22, %c3, %c0_23] : memref<1x1x134x128xf32, #tpu.memory_space<vmem>>, vector<1x1x128x128xf32>
    %20 = vector.shape_cast %19 : vector<1x1x128x128xf32> to vector<128x128xf32>
    %c3_24 = arith.constant 3 : index
    %c0_25 = arith.constant 0 : index
    %c0_26 = arith.constant 0 : index
    %21 = vector.load %arg3[%c3_24, %c0_25, %c0_26] : memref<7x128x128xf32, #tpu.memory_space<vmem>>, vector<1x128x128xf32>
    %22 = vector.shape_cast %21 : vector<1x128x128xf32> to vector<128x128xf32>
    %cst_27 = arith.constant dense<0.000000e+00> : vector<128x128xf32>
    %23 = tpu.matmul %20, %22, %cst_27 {dimension_numbers = #tpu.dot_dimension_numbers<[1], [0], [0], [1], [0, 0, 1, 1], [], []>} : vector<128x128xf32>, vector<128x128xf32>, vector<128x128xf32> -> vector<128x128xf32>
    %24 = arith.addf %18, %23 : vector<128x128xf32>
    %c0_28 = arith.constant 0 : index
    %c0_29 = arith.constant 0 : index
    %c4 = arith.constant 4 : index
    %c0_30 = arith.constant 0 : index
    %25 = vector.load %arg1[%c0_28, %c0_29, %c4, %c0_30] : memref<1x1x134x128xf32, #tpu.memory_space<vmem>>, vector<1x1x128x128xf32>
    %26 = vector.shape_cast %25 : vector<1x1x128x128xf32> to vector<128x128xf32>
    %c4_31 = arith.constant 4 : index
    %c0_32 = arith.constant 0 : index
    %c0_33 = arith.constant 0 : index
    %27 = vector.load %arg3[%c4_31, %c0_32, %c0_33] : memref<7x128x128xf32, #tpu.memory_space<vmem>>, vector<1x128x128xf32>
    %28 = vector.shape_cast %27 : vector<1x128x128xf32> to vector<128x128xf32>
    %cst_34 = arith.constant dense<0.000000e+00> : vector<128x128xf32>
    %29 = tpu.matmul %26, %28, %cst_34 {dimension_numbers = #tpu.dot_dimension_numbers<[1], [0], [0], [1], [0, 0, 1, 1], [], []>} : vector<128x128xf32>, vector<128x128xf32>, vector<128x128xf32> -> vector<128x128xf32>
    %30 = arith.addf %24, %29 : vector<128x128xf32>
    %c0_35 = arith.constant 0 : index
    %c0_36 = arith.constant 0 : index
    %c5 = arith.constant 5 : index
    %c0_37 = arith.constant 0 : index
    %31 = vector.load %arg1[%c0_35, %c0_36, %c5, %c0_37] : memref<1x1x134x128xf32, #tpu.memory_space<vmem>>, vector<1x1x128x128xf32>
    %32 = vector.shape_cast %31 : vector<1x1x128x128xf32> to vector<128x128xf32>
    %c5_38 = arith.constant 5 : index
    %c0_39 = arith.constant 0 : index
    %c0_40 = arith.constant 0 : index
    %33 = vector.load %arg3[%c5_38, %c0_39, %c0_40] : memref<7x128x128xf32, #tpu.memory_space<vmem>>, vector<1x128x128xf32>
    %34 = vector.shape_cast %33 : vector<1x128x128xf32> to vector<128x128xf32>
    %cst_41 = arith.constant dense<0.000000e+00> : vector<128x128xf32>
    %35 = tpu.matmul %32, %34, %cst_41 {dimension_numbers = #tpu.dot_dimension_numbers<[1], [0], [0], [1], [0, 0, 1, 1], [], []>} : vector<128x128xf32>, vector<128x128xf32>, vector<128x128xf32> -> vector<128x128xf32>
    %36 = arith.addf %30, %35 : vector<128x128xf32>
    %c0_42 = arith.constant 0 : index
    %c0_43 = arith.constant 0 : index
    %c6 = arith.constant 6 : index
    %c0_44 = arith.constant 0 : index
    %37 = vector.load %arg1[%c0_42, %c0_43, %c6, %c0_44] : memref<1x1x134x128xf32, #tpu.memory_space<vmem>>, vector<1x1x128x128xf32>
    %38 = vector.shape_cast %37 : vector<1x1x128x128xf32> to vector<128x128xf32>
    %c6_45 = arith.constant 6 : index
    %c0_46 = arith.constant 0 : index
    %c0_47 = arith.constant 0 : index
    %39 = vector.load %arg3[%c6_45, %c0_46, %c0_47] : memref<7x128x128xf32, #tpu.memory_space<vmem>>, vector<1x128x128xf32>
    %40 = vector.shape_cast %39 : vector<1x128x128xf32> to vector<128x128xf32>
    %cst_48 = arith.constant dense<0.000000e+00> : vector<128x128xf32>
    %41 = tpu.matmul %38, %40, %cst_48 {dimension_numbers = #tpu.dot_dimension_numbers<[1], [0], [0], [1], [0, 0, 1, 1], [], []>} : vector<128x128xf32>, vector<128x128xf32>, vector<128x128xf32> -> vector<128x128xf32>
    %42 = arith.addf %36, %41 : vector<128x128xf32>
    %c0_49 = arith.constant 0 : index
    %c0_50 = arith.constant 0 : index
    %43 = vector.load %arg4[%c0_49, %c0_50] : memref<1x128xf32, #tpu.memory_space<vmem>>, vector<1x128xf32>
    %44 = vector.broadcast %43 : vector<1x128xf32> to vector<128x128xf32>
    %45 = arith.addf %42, %44 : vector<128x128xf32>
    %cst_51 = arith.constant 0.000000e+00 : f32
    %46 = vector.broadcast %cst_51 : f32 to vector<128x128xf32>
    %47 = arith.cmpf oge, %45, %46 : vector<128x128xf32>
    %cst_52 = arith.constant 2.000000e-01 : f32
    %48 = vector.broadcast %cst_52 : f32 to vector<128x128xf32>
    %49 = arith.mulf %48, %45 : vector<128x128xf32>
    %50 = arith.select %47, %45, %49 : vector<128x128xi1>, vector<128x128xf32>
    %c0_53 = arith.constant 0 : index
    %c0_54 = arith.constant 0 : index
    %51 = vector.load %arg5[%c0_53, %c0_54] : memref<2x128xf32, #tpu.memory_space<vmem>>, vector<1x128xf32>
    %52 = vector.broadcast %51 : vector<1x128xf32> to vector<128x128xf32>
    %53 = arith.mulf %52, %50 : vector<128x128xf32>
    %c1_55 = arith.constant 1 : index
    %c0_56 = arith.constant 0 : index
    %54 = vector.load %arg5[%c1_55, %c0_56] : memref<2x128xf32, #tpu.memory_space<vmem>>, vector<1x128xf32>
    %c0_57 = arith.constant 0 : index
    %c0_58 = arith.constant 0 : index
    %c0_59 = arith.constant 0 : index
    %55 = vector.load %arg2[%c0_57, %c0_58, %c0_59] : memref<1x128x128xf32, #tpu.memory_space<vmem>>, vector<1x128x128xf32>
    %56 = vector.shape_cast %55 : vector<1x128x128xf32> to vector<128x128xf32>
    %57 = vector.broadcast %54 : vector<1x128xf32> to vector<128x128xf32>
    %58 = arith.mulf %57, %56 : vector<128x128xf32>
    %59 = arith.addf %53, %58 : vector<128x128xf32>
    %c0_60 = arith.constant 0 : index
    %c0_61 = arith.constant 0 : index
    %c0_62 = arith.constant 0 : index
    %60 = vector.load %arg6[%c0_60, %c0_61, %c0_62] : memref<1x128x128xf32, #tpu.memory_space<vmem>>, vector<1x128x128xf32>
    %61 = vector.shape_cast %60 : vector<1x128x128xf32> to vector<128x128xf32>
    %62 = vector.shape_cast %59 : vector<128x128xf32> to vector<1x128x128xf32>
    tpu.vector_store %arg6[%c0_60, %c0_61, %c0_62], %62 {strides = array<i32>} : memref<1x128x128xf32, #tpu.memory_space<vmem>>, vector<1x128x128xf32>,
    return
  }
  func.func @transform_0(%arg0: i32) -> (i32, i32, i32, i32) {
    %c0_i32 = arith.constant 0 : i32
    %c0_i32_0 = arith.constant 0 : i32
    %c0_i32_1 = arith.constant 0 : i32
    %c0_i32_2 = arith.constant 0 : i32
    return %arg0, %c0_i32, %c0_i32_0, %c0_i32_1 : i32, i32, i32, i32
  }
  func.func @transform_1(%arg0: i32) -> (i32, i32, i32) {
    %c0_i32 = arith.constant 0 : i32
    %c0_i32_0 = arith.constant 0 : i32
    %c0_i32_1 = arith.constant 0 : i32
    return %arg0, %c0_i32, %c0_i32_0 : i32, i32, i32
  }
  func.func @transform_2(%arg0: i32) -> (i32, i32, i32) {
    %c0_i32 = arith.constant 0 : i32
    %c0_i32_0 = arith.constant 0 : i32
    %c0_i32_1 = arith.constant 0 : i32
    %c0_i32_2 = arith.constant 0 : i32
    return %c0_i32, %c0_i32_0, %c0_i32_1 : i32, i32, i32
  }
  func.func @transform_3(%arg0: i32) -> (i32, i32) {
    %c0_i32 = arith.constant 0 : i32
    %c0_i32_0 = arith.constant 0 : i32
    %c0_i32_1 = arith.constant 0 : i32
    return %c0_i32, %c0_i32_0 : i32, i32
  }
  func.func @transform_4(%arg0: i32) -> (i32, i32) {
    %c0_i32 = arith.constant 0 : i32
    %c0_i32_0 = arith.constant 0 : i32
    %c0_i32_1 = arith.constant 0 : i32
    return %c0_i32, %c0_i32_0 : i32, i32
  }
  func.func @transform_5(%arg0: i32) -> (i32, i32, i32) {
    %c0_i32 = arith.constant 0 : i32
    %c0_i32_0 = arith.constant 0 : i32
    %c0_i32_1 = arith.constant 0 : i32
    return %arg0, %c0_i32, %c0_i32_0 : i32, i32, i32
  }
}

</mosaic_0001>

<llo_original>
// kernel: tpu_custom_call.1
$region0: #{tpu_custom_call.1}
  #allocation0 [shape = 'u32[]', space=smem, size = 0x4, offset = 0x4, fixed_abs, tag = 'smem constant byte address 0x4 - core index']
  #allocation1 [shape = 'u32[144,128]{1,0:T(1,128)}', space=vmem, size = 0x12000, scoped, tag = 'internal scratch']
  %s0 = inlined_call_operand.vmem [shape: f32[4,1,134,128], index: 0, kind: input, shape index: {}]
  %s1 = inlined_call_operand.hbm [shape: f32[4,128,128], index: 1, kind: input, shape index: {}]
  %s2 = inlined_call_operand.vmem [shape: f32[7,128,128], index: 2, kind: input, shape index: {}]
  %s3 = inlined_call_operand.vmem [shape: f32[1,128], index: 3, kind: input, shape index: {}]
  %s4 = inlined_call_operand.vmem [shape: f32[2,128], index: 4, kind: input, shape index: {}]
  %s5 = inlined_call_operand.hbm [shape: f32[4,128,128], index: 5, kind: output, shape index: {}]
  %s6 = sld [smem:[#allocation0]]
  $region57: #{tpu_custom_call.1} parent=0
    _
  %s8 = ssub.s32 1, %s6
  %s9 = scalar_select 0, %s8, %s6
  $region1: #{tpu_custom_call.1} parent=0
    #allocation2 [shape = 'u8[131072]{0}', space=vmem, size = 0x20000, scoped, tag = 'input window, operand 1']
    #allocation3 [shape = 's32[2]{0}', space=sflag, size = 0x8, scoped, tag = 'scoped memory for tpu_custom_call.1']
    #allocation4 [shape = 's32[2]{0}', space=sflag, size = 0x8, scoped, tag = 'scoped memory for tpu_custom_call.1']
    #allocation5 [shape = 'u8[131072]{0}', space=vmem, size = 0x20000, scoped, tag = 'output window, operand 0']
    %10 = vsyncpa [#allocation3], 0
    %s11 = scalar_lea.sflag [#allocation3], 1
    %12 = vsyncpa %s11, 0
    %13 = vsyncpa [#allocation4], 0
    %s14 = scalar_lea.sflag [#allocation4], 1
    %15 = vsyncpa %s14, 0
    loop: start=0, step=1, limit=6
    $region2: #{tpu_custom_call.1} parent=1 // loop_pre_header
      _
    $region3: #{tpu_custom_call.1} parent=1 // loop_header
      %s17 = sphi 0, %s21
      %p18 = scmp.ge.s32.totalorder %s17, 6
      %s27 = sphi 0, %s29
      %s30 = sphi 0, %s27
      %s31 = sphi 0, %s30
      %s47 = sphi 0, %s31
      %s53 = sphi 0, %s55
      %s56 = sphi 0, %s53
      %s57 = sphi 0, %s56
      %s73 = sphi 0, %s57
      %s77 = sphi 0, %s77
      %s79 = sphi 0, %s77
      %s80 = sphi 0, %s79
      %s94 = sphi 0, %s80
      %s98 = sphi 0, %s98
      %s100 = sphi 0, %s98
      %s101 = sphi 0, %s100
      %s115 = sphi 0, %s101
      %s119 = sphi 0, %s119
      %s121 = sphi 0, %s119
      %s122 = sphi 0, %s121
      %s136 = sphi 0, %s122
      %s142 = sphi 0, %s144
      %s145 = sphi 0, %s142
      %s146 = sphi 0, %s145
      %s162 = sphi 0, %s146
    $region4: #{tpu_custom_call.1} parent=1 // loop_header_branch
      %20 = sbr.rel (%p18) target = $region8
    $region5: #{tpu_custom_call.1} parent=1 // loop_body
      %s22 = ssub.s32 %s17, 1
      %s23 = ssub.s32 %s17, 2
      %s24 = sadd.s32 %s17, 1
      %s25 = ssub.s32 %s17, %s24
      %p26 = scmp.eq.s32.totalorder %s25, 0
      %s28 = sadd.s32 %s27, 1
      %s29 = scalar_select %p26, %s27, %s28
      %p32 = pneg %p26
      %p33 = scmp.eq.s32.totalorder %s17, 3
      %p34 = por %p32, %p33
      %p35 = scmp.ne.s32.totalorder %s27, %s30
      %p36 = scmp.eq.s32.totalorder %s17, 0
      %p37 = por %p35, %p36
      %p38 = scmp.ne.s32.totalorder %s27, %s30
      %p39 = scmp.eq.s32.totalorder %s22, 3
      %p40 = por %p38, %p39
      %p41 = scmp.ne.s32.totalorder %s30, %s31
      %p42 = scmp.eq.s32.totalorder %s22, 0
      %p43 = por %p41, %p42
      %p44 = scmp.ne.s32.totalorder %s30, %s31
      %p45 = scmp.eq.s32.totalorder %s23, 3
      %p46 = por %p44, %p45
      %p48 = scmp.ne.s32.totalorder %s31, %s47
      %p49 = scmp.eq.s32.totalorder %s23, 0
      %p50 = por %p48, %p49
      %s51 = ssub.s32 %s17, %s24
      %p52 = scmp.eq.s32.totalorder %s51, 0
      %s54 = sadd.s32 %s53, 1
      %s55 = scalar_select %p52, %s53, %s54
      %p58 = pneg %p52
      %p59 = scmp.eq.s32.totalorder %s17, 3
      %p60 = por %p58, %p59
      %p61 = scmp.ne.s32.totalorder %s53, %s56
      %p62 = scmp.eq.s32.totalorder %s17, 0
      %p63 = por %p61, %p62
      %p64 = scmp.ne.s32.totalorder %s53, %s56
      %p65 = scmp.eq.s32.totalorder %s22, 3
      %p66 = por %p64, %p65
      %p67 = scmp.ne.s32.totalorder %s56, %s57
      %p68 = scmp.eq.s32.totalorder %s22, 0
      %p69 = por %p67, %p68
      %p70 = scmp.ne.s32.totalorder %s56, %s57
      %p71 = scmp.eq.s32.totalorder %s23, 3
      %p72 = por %p70, %p71
      %p74 = scmp.ne.s32.totalorder %s57, %s73
      %p75 = scmp.eq.s32.totalorder %s23, 0
      %p76 = por %p74, %p75
      %s78 = sadd.s32 %s77, 1
      %p81 = scmp.eq.s32.totalorder %s17, 3
      %p82 = scmp.ne.s32.totalorder %s77, %s79
      %p83 = scmp.eq.s32.totalorder %s17, 0
      %p84 = por %p82, %p83
      %p85 = scmp.ne.s32.totalorder %s77, %s79
      %p86 = scmp.eq.s32.totalorder %s22, 3
      %p87 = por %p85, %p86
      %p88 = scmp.ne.s32.totalorder %s79, %s80
      %p89 = scmp.eq.s32.totalorder %s22, 0
      %p90 = por %p88, %p89
      %p91 = scmp.ne.s32.totalorder %s79, %s80
      %p92 = scmp.eq.s32.totalorder %s23, 3
      %p93 = por %p91, %p92
      %p95 = scmp.ne.s32.totalorder %s80, %s94
      %p96 = scmp.eq.s32.totalorder %s23, 0
      %p97 = por %p95, %p96
      %s99 = sadd.s32 %s98, 1
      %p102 = scmp.eq.s32.totalorder %s17, 3
      %p103 = scmp.ne.s32.totalorder %s98, %s100
      %p104 = scmp.eq.s32.totalorder %s17, 0
      %p105 = por %p103, %p104
      %p106 = scmp.ne.s32.totalorder %s98, %s100
      %p107 = scmp.eq.s32.totalorder %s22, 3
      %p108 = por %p106, %p107
      %p109 = scmp.ne.s32.totalorder %s100, %s101
      %p110 = scmp.eq.s32.totalorder %s22, 0
      %p111 = por %p109, %p110
      %p112 = scmp.ne.s32.totalorder %s100, %s101
      %p113 = scmp.eq.s32.totalorder %s23, 3
      %p114 = por %p112, %p113
      %p116 = scmp.ne.s32.totalorder %s101, %s115
      %p117 = scmp.eq.s32.totalorder %s23, 0
      %p118 = por %p116, %p117
      %s120 = sadd.s32 %s119, 1
      %p123 = scmp.eq.s32.totalorder %s17, 3
      %p124 = scmp.ne.s32.totalorder %s119, %s121
      %p125 = scmp.eq.s32.totalorder %s17, 0
      %p126 = por %p124, %p125
      %p127 = scmp.ne.s32.totalorder %s119, %s121
      %p128 = scmp.eq.s32.totalorder %s22, 3
      %p129 = por %p127, %p128
      %p130 = scmp.ne.s32.totalorder %s121, %s122
      %p131 = scmp.eq.s32.totalorder %s22, 0
      %p132 = por %p130, %p131
      %p133 = scmp.ne.s32.totalorder %s121, %s122
      %p134 = scmp.eq.s32.totalorder %s23, 3
      %p135 = por %p133, %p134
      %p137 = scmp.ne.s32.totalorder %s122, %s136
      %p138 = scmp.eq.s32.totalorder %s23, 0
      %p139 = por %p137, %p138
      %s140 = ssub.s32 %s17, %s24
      %p141 = scmp.eq.s32.totalorder %s140, 0
      %s143 = sadd.s32 %s142, 1
      %s144 = scalar_select %p141, %s142, %s143
      %p147 = pneg %p141
      %p148 = scmp.eq.s32.totalorder %s17, 3
      %p149 = por %p147, %p148
      %p150 = scmp.ne.s32.totalorder %s142, %s145
      %p151 = scmp.eq.s32.totalorder %s17, 0
      %p152 = por %p150, %p151
      %p153 = scmp.ne.s32.totalorder %s142, %s145
      %p154 = scmp.eq.s32.totalorder %s22, 3
      %p155 = por %p153, %p154
      %p156 = scmp.ne.s32.totalorder %s145, %s146
      %p157 = scmp.eq.s32.totalorder %s22, 0
      %p158 = por %p156, %p157
      %p159 = scmp.ne.s32.totalorder %s145, %s146
      %p160 = scmp.eq.s32.totalorder %s23, 3
      %p161 = por %p159, %p160
      %p163 = scmp.ne.s32.totalorder %s146, %s162
      %p164 = scmp.eq.s32.totalorder %s23, 0
      %p165 = por %p163, %p164
      %p166 = scmp.le.s32.totalorder 1, %s17
      %p167 = scmp.lt.s32.totalorder %s17, 5
      %p168 = pnand %p166, %p167
      %p169 = pneg %p168
      // Predicated region
      $region9: #{tpu_custom_call.1} parent=5 // pred_check
        _
      $region10: #{tpu_custom_call.1} parent=5 // pred_check_branch
        %171 = sbr.rel (%p168) target = $region12
      $region11: #{tpu_custom_call.1} parent=5 // pred_region
        %s172 = ssub.s32 %s17, 1
        // Predicated region
        $region13: #{tpu_custom_call.1} parent=11 // pred_check
          %p173 = pneg %p90
        $region14: #{tpu_custom_call.1} parent=11 // pred_check_branch
          %175 = sbr.rel (%p173) target = $region16
        $region15: #{tpu_custom_call.1} parent=11 // pred_region
          _
        $region16: #{tpu_custom_call.1} parent=11 // pred_fallthru
          _
        // Predicated region
        $region17: #{tpu_custom_call.1} parent=11 // pred_check
          %p176 = pneg %p111
        $region18: #{tpu_custom_call.1} parent=11 // pred_check_branch
          %178 = sbr.rel (%p176) target = $region20
        $region19: #{tpu_custom_call.1} parent=11 // pred_region
          _
        $region20: #{tpu_custom_call.1} parent=11 // pred_fallthru
          _
        // Predicated region
        $region21: #{tpu_custom_call.1} parent=11 // pred_check
          %p179 = pneg %p132
        $region22: #{tpu_custom_call.1} parent=11 // pred_check_branch
          %181 = sbr.rel (%p179) target = $region24
        $region23: #{tpu_custom_call.1} parent=11 // pred_region
          _
        $region24: #{tpu_custom_call.1} parent=11 // pred_fallthru
          _
      $region12: #{tpu_custom_call.1} parent=5 // pred_fallthru
        _
      %p182 = scmp.lt.s32.totalorder %s17, 4
      // Predicated region
      $region25: #{tpu_custom_call.1} parent=5 // pred_check
        %p183 = pneg %p182
      $region26: #{tpu_custom_call.1} parent=5 // pred_check_branch
        %185 = sbr.rel (%p183) target = $region28
      $region27: #{tpu_custom_call.1} parent=5 // pred_region
        // Predicated region
        $region29: #{tpu_custom_call.1} parent=27 // pred_check
          %p186 = pneg %p37
        $region30: #{tpu_custom_call.1} parent=27 // pred_check_branch
          %188 = sbr.rel (%p186) target = $region32
        $region31: #{tpu_custom_call.1} parent=27 // pred_region
          %p189 = scmp.lt.s32.totalorder %s17, 3
          %s190 = scalar_select %p189, %s17, 3
          %s191 = smul.addr %s190, 17
          %s192 = smul.addr %s191, 8
          %s193 = scalar_lea.vmem %s0, %s192
        $region32: #{tpu_custom_call.1} parent=27 // pred_fallthru
          _
        // Predicated region
        $region33: #{tpu_custom_call.1} parent=27 // pred_check
          %p194 = pneg %p63
        $region34: #{tpu_custom_call.1} parent=27 // pred_check_branch
          %196 = sbr.rel (%p194) target = $region36
        $region35: #{tpu_custom_call.1} parent=27 // pred_region
          %s197 = sand.u32 %s53, 1
          %s198 = scalar_lea.sflag [#allocation3], %s197
          %s199 = sand.u32 %s53, 1
          %s200 = smul.addr %s199, 128
          %s201 = scalar_lea.vmem [#allocation2], %s200
          %s203 = ssub.s32 2048, 2048
          %204 = vsyncadd %s198, %s203
          %s205 = smul.addr %s17, 16
          %s206 = smul.addr %s205, 128
          %s207 = scalar_lea.hbm %s1, %s206
          %s208 = sshll.u32 %s201, 4
          %s209 = int_to_ptr.vmem [resolvable:$true] %s208
          %214 = dma.hbm_to_vmem [thread:$0]  %s207, 2048, %s209, %s198, 128, 128, 8
        $region36: #{tpu_custom_call.1} parent=27 // pred_fallthru
          _
      $region28: #{tpu_custom_call.1} parent=5 // pred_fallthru
        _
      %p215 = scmp.le.s32.totalorder 1, %s17
      %p216 = scmp.lt.s32.totalorder %s17, 5
      %p217 = pnand %p215, %p216
      %p218 = pneg %p217
      // Predicated region
      $region37: #{tpu_custom_call.1} parent=5 // pred_check
        _
      $region38: #{tpu_custom_call.1} parent=5 // pred_check_branch
        %220 = sbr.rel (%p217) target = $region40
      $region39: #{tpu_custom_call.1} parent=5 // pred_region
        %s221 = ssub.s32 %s17, 1
        %s222 = sand.u32 %s56, 1
        %s223 = scalar_lea.sflag [#allocation3], %s222
        %s224 = sand.u32 %s56, 1
        %s225 = smul.addr %s224, 128
        %s226 = scalar_lea.vmem [#allocation2], %s225
        // Predicated region
        $region41: #{tpu_custom_call.1} parent=39 // pred_check
          %p227 = pneg %p69
        $region42: #{tpu_custom_call.1} parent=39 // pred_check_branch
          %229 = sbr.rel (%p227) target = $region44
        $region43: #{tpu_custom_call.1} parent=39 // pred_region
          %230 = dma.done %s223, 2048
        $region44: #{tpu_custom_call.1} parent=39 // pred_fallthru
          _
        %p231 = scmp.lt.s32.totalorder %s22, 3
        %s232 = scalar_select %p231, %s22, 3
        %s233 = smul.addr %s232, 17
        %s234 = smul.addr %s233, 8
        %s235 = scalar_lea.vmem %s0, %s234
        %p236 = pneg %p43
        %p237 = pneg %p40
        %s238 = sand.u32 %s56, 1
        %s239 = scalar_lea.sflag [#allocation3], %s238
        %s240 = sand.u32 %s56, 1
        %s241 = smul.addr %s240, 128
        %s242 = scalar_lea.vmem [#allocation2], %s241
        %p243 = pneg %p69
        %p244 = pneg %p66
        %p245 = pneg %p90
        %p246 = pneg %p87
        %p247 = pneg %p111
        %p248 = pneg %p108
        %p249 = pneg %p132
        %p250 = pneg %p129
        %p251 = pneg %p158
        %p252 = pneg %p155
        %s253 = sand.u32 %s145, 1
        %s254 = scalar_lea.sflag [#allocation4], %s253
        %s255 = sand.u32 %s145, 1
        %s256 = smul.addr %s255, 128
        %s257 = scalar_lea.vmem [#allocation5], %s256
        %p258 = scmp.lt.s32.totalorder %s22, 3
        %s259 = scalar_select %p258, %s22, 3
        %s260 = smul.addr %s259, 17
        %s261 = smul.addr %s260, 8
        %s262 = scalar_lea.vmem %s0, %s261
        %v263 = vld [vmem:[%s262] sm:$0xff]
        %v264 = vld [vmem:[%s262 + $0x8] sm:$0xff]
        %v265 = vld [vmem:[%s262 + $0x10] sm:$0xff]
        %v266 = vld [vmem:[%s262 + $0x18] sm:$0xff]
        %v267 = vld [vmem:[%s262 + $0x20] sm:$0xff]
        %v268 = vld [vmem:[%s262 + $0x28] sm:$0xff]
        %v269 = vld [vmem:[%s262 + $0x30] sm:$0xff]
        %v270 = vld [vmem:[%s262 + $0x38] sm:$0xff]
        %v271 = vld [vmem:[%s262 + $0x40] sm:$0xff]
        %v272 = vld [vmem:[%s262 + $0x48] sm:$0xff]
        %v273 = vld [vmem:[%s262 + $0x50] sm:$0xff]
        %v274 = vld [vmem:[%s262 + $0x58] sm:$0xff]
        %v275 = vld [vmem:[%s262 + $0x60] sm:$0xff]
        %v276 = vld [vmem:[%s262 + $0x68] sm:$0xff]
        %v277 = vld [vmem:[%s262 + $0x70] sm:$0xff]
        %v278 = vld [vmem:[%s262 + $0x78] sm:$0xff]
        %v279 = vld [vmem:[%s2] sm:$0xff]
        %v280 = vld [vmem:[%s2 + $0x8] sm:$0xff]
        %v281 = vld [vmem:[%s2 + $0x10] sm:$0xff]
        %v282 = vld [vmem:[%s2 + $0x18] sm:$0xff]
        %v283 = vld [vmem:[%s2 + $0x20] sm:$0xff]
        %v284 = vld [vmem:[%s2 + $0x28] sm:$0xff]
        %v285 = vld [vmem:[%s2 + $0x30] sm:$0xff]
        %v286 = vld [vmem:[%s2 + $0x38] sm:$0xff]
        %v287 = vld [vmem:[%s2 + $0x40] sm:$0xff]
        %v288 = vld [vmem:[%s2 + $0x48] sm:$0xff]
        %v289 = vld [vmem:[%s2 + $0x50] sm:$0xff]
        %v290 = vld [vmem:[%s2 + $0x58] sm:$0xff]
        %v291 = vld [vmem:[%s2 + $0x60] sm:$0xff]
        %v292 = vld [vmem:[%s2 + $0x68] sm:$0xff]
        %v293 = vld [vmem:[%s2 + $0x70] sm:$0xff]
        %v294 = vld [vmem:[%s2 + $0x78] sm:$0xff]
        %v295 = vld [vmem:[%s262 + $0x1] sm:$0xff]
        %v296 = vld [vmem:[%s262 + $0x9] sm:$0xff]
        %v297 = vld [vmem:[%s262 + $0x11] sm:$0xff]
        %v298 = vld [vmem:[%s262 + $0x19] sm:$0xff]
        %v299 = vld [vmem:[%s262 + $0x21] sm:$0xff]
        %v300 = vld [vmem:[%s262 + $0x29] sm:$0xff]
        %v301 = vld [vmem:[%s262 + $0x31] sm:$0xff]
        %v302 = vld [vmem:[%s262 + $0x39] sm:$0xff]
        %v303 = vld [vmem:[%s262 + $0x41] sm:$0xff]
        %v304 = vld [vmem:[%s262 + $0x49] sm:$0xff]
        %v305 = vld [vmem:[%s262 + $0x51] sm:$0xff]
        %v306 = vld [vmem:[%s262 + $0x59] sm:$0xff]
        %v307 = vld [vmem:[%s262 + $0x61] sm:$0xff]
        %v308 = vld [vmem:[%s262 + $0x69] sm:$0xff]
        %v309 = vld [vmem:[%s262 + $0x71] sm:$0xff]
        %v310 = vld [vmem:[%s262 + $0x79] sm:$0xff]
        %s311 = scalar_lea.vmem %s2, 128
        %v312 = vld [vmem:[%s311] sm:$0xff]
        %v313 = vld [vmem:[%s311 + $0x8] sm:$0xff]
        %v314 = vld [vmem:[%s311 + $0x10] sm:$0xff]
        %v315 = vld [vmem:[%s311 + $0x18] sm:$0xff]
        %v316 = vld [vmem:[%s311 + $0x20] sm:$0xff]
        %v317 = vld [vmem:[%s311 + $0x28] sm:$0xff]
        %v318 = vld [vmem:[%s311 + $0x30] sm:$0xff]
        %v319 = vld [vmem:[%s311 + $0x38] sm:$0xff]
        %v320 = vld [vmem:[%s311 + $0x40] sm:$0xff]
        %v321 = vld [vmem:[%s311 + $0x48] sm:$0xff]
        %v322 = vld [vmem:[%s311 + $0x50] sm:$0xff]
        %v323 = vld [vmem:[%s311 + $0x58] sm:$0xff]
        %v324 = vld [vmem:[%s311 + $0x60] sm:$0xff]
        %v325 = vld [vmem:[%s311 + $0x68] sm:$0xff]
        %v326 = vld [vmem:[%s311 + $0x70] sm:$0xff]
        %v327 = vld [vmem:[%s311 + $0x78] sm:$0xff]
        %328 = vmatprep.subr.mxu0 0.0
        %329 = vmatpush1.msra.mxu0 %v312
        %330 = vmatprep.subr.mxu0 0.0
        %331 = vmatpush1.msra.mxu0 %v313
        %332 = vmatprep.subr.mxu0 0.0
        %333 = vmatpush1.msra.mxu0 %v314
        %334 = vmatprep.subr.mxu0 0.0
        %335 = vmatpush1.msra.mxu0 %v315
        %336 = vmatprep.subr.mxu0 0.0
        %337 = vmatpush1.msra.mxu0 %v316
        %338 = vmatprep.subr.mxu0 0.0
        %339 = vmatpush1.msra.mxu0 %v317
        %340 = vmatprep.subr.mxu0 0.0
        %341 = vmatpush1.msra.mxu0 %v318
        %342 = vmatprep.subr.mxu0 0.0
        %343 = vmatpush1.msra.mxu0 %v319
        %344 = vmatprep.subr.mxu0 0.0
        %345 = vmatpush1.msra.mxu0 %v320
        %346 = vmatprep.subr.mxu0 0.0
        %347 = vmatpush1.msra.mxu0 %v321
        %348 = vmatprep.subr.mxu0 0.0
        %349 = vmatpush1.msra.mxu0 %v322
        %350 = vmatprep.subr.mxu0 0.0
        %351 = vmatpush1.msra.mxu0 %v323
        %352 = vmatprep.subr.mxu0 0.0
        %353 = vmatpush1.msra.mxu0 %v324
        %354 = vmatprep.subr.mxu0 0.0
        %355 = vmatpush1.msra.mxu0 %v325
        %356 = vmatprep.subr.mxu0 0.0
        %357 = vmatpush1.msra.mxu0 %v326
        %358 = vmatprep.subr.mxu0 0.0
        %359 = vmatpush1.msra.mxu0 %v327
        %360 = vmatprep.subr.mxu0 0.0
        %361 = vmatpush1.msra.mxu0 0.0
        %362 = vmatprep.subr.mxu0 0.0
        %363 = vmatpush1.msra.mxu0 0.0
        %364 = vmatprep.subr.mxu0 0.0
        %365 = vmatpush1.msra.mxu0 0.0
        %366 = vmatprep.subr.mxu0 0.0
        %367 = vmatpush1.msra.mxu0 0.0
        %368 = vmatprep.subr.mxu0 0.0
        %369 = vmatpush1.msra.mxu0 0.0
        %370 = vmatprep.subr.mxu0 0.0
        %371 = vmatpush1.msra.mxu0 0.0
        %372 = vmatprep.subr.mxu0 0.0
        %373 = vmatpush1.msra.mxu0 0.0
        %374 = vmatprep.subr.mxu0 0.0
        %375 = vmatpush1.msra.mxu0 0.0
        %376 = vmatprep.subr.mxu0 0.0
        %377 = vmatpush1.msra.mxu0 0.0
        %378 = vmatprep.subr.mxu0 0.0
        %379 = vmatpush1.msra.mxu0 0.0
        %380 = vmatprep.subr.mxu0 0.0
        %381 = vmatpush1.msra.mxu0 0.0
        %382 = vmatprep.subr.mxu0 0.0
        %383 = vmatpush1.msra.mxu0 0.0
        %384 = vmatprep.subr.mxu0 0.0
        %385 = vmatpush1.msra.mxu0 0.0
        %386 = vmatprep.subr.mxu0 0.0
        %387 = vmatpush1.msra.mxu0 0.0
        %388 = vmatprep.subr.mxu0 0.0
        %389 = vmatpush1.msra.mxu0 0.0
        %390 = vmatprep.subr.mxu0 0.0
        %391 = vmatpush1.msra.mxu0 0.0
        %392 = vmatprep.mubr.f32.mxu0 0.0
        %393 = vmatmul.mubr.f32.gmra.mrb[0].mxu0 %v295
        %v394 = vpop.f32.mrb[0].mxu0
        %v395 = vadd.f32 0.0, %v394
        %v396 = vpop.f32.mrb[0].mxu0
        %397 = vmatprep.mubr.f32.mxu0 0.0
        %398 = vmatmul.mubr.f32.gmra.mrb[0].mxu0 %v296
        %v399 = vpop.f32.mrb[0].mxu0
        %v400 = vadd.f32 0.0, %v399
        %v401 = vpop.f32.mrb[0].mxu0
        %402 = vmatprep.mubr.f32.mxu0 0.0
        %403 = vmatmul.mubr.f32.gmra.mrb[0].mxu0 %v297
        %v404 = vpop.f32.mrb[0].mxu0
        %v405 = vadd.f32 0.0, %v404
        %v406 = vpop.f32.mrb[0].mxu0
        %407 = vmatprep.mubr.f32.mxu0 0.0
        %408 = vmatmul.mubr.f32.gmra.mrb[0].mxu0 %v298
        %v409 = vpop.f32.mrb[0].mxu0
        %v410 = vadd.f32 0.0, %v409
        %v411 = vpop.f32.mrb[0].mxu0
        %412 = vmatprep.mubr.f32.mxu0 0.0
        %413 = vmatmul.mubr.f32.gmra.mrb[0].mxu0 %v299
        %v414 = vpop.f32.mrb[0].mxu0
        %v415 = vadd.f32 0.0, %v414
        %v416 = vpop.f32.mrb[0].mxu0
        %417 = vmatprep.mubr.f32.mxu0 0.0
        %418 = vmatmul.mubr.f32.gmra.mrb[0].mxu0 %v300
        %v419 = vpop.f32.mrb[0].mxu0
        %v420 = vadd.f32 0.0, %v419
        %v421 = vpop.f32.mrb[0].mxu0
        %422 = vmatprep.mubr.f32.mxu0 0.0
        %423 = vmatmul.mubr.f32.gmra.mrb[0].mxu0 %v301
        %v424 = vpop.f32.mrb[0].mxu0
        %v425 = vadd.f32 0.0, %v424
        %v426 = vpop.f32.mrb[0].mxu0
        %427 = vmatprep.mubr.f32.mxu0 0.0
        %428 = vmatmul.mubr.f32.gmra.mrb[0].mxu0 %v302
        %v429 = vpop.f32.mrb[0].mxu0
        %v430 = vadd.f32 0.0, %v429
        %v431 = vpop.f32.mrb[0].mxu0
        %432 = vmatprep.mubr.f32.mxu0 0.0
        %433 = vmatmul.mubr.f32.gmra.mrb[0].mxu0 %v303
        %v434 = vpop.f32.mrb[0].mxu0
        %v435 = vadd.f32 0.0, %v434
        %v436 = vpop.f32.mrb[0].mxu0
        %437 = vmatprep.mubr.f32.mxu0 0.0
        %438 = vmatmul.mubr.f32.gmra.mrb[0].mxu0 %v304
        %v439 = vpop.f32.mrb[0].mxu0
        %v440 = vadd.f32 0.0, %v439
        %v441 = vpop.f32.mrb[0].mxu0
        %442 = vmatprep.mubr.f32.mxu0 0.0
        %443 = vmatmul.mubr.f32.gmra.mrb[0].mxu0 %v305
        %v444 = vpop.f32.mrb[0].mxu0
        %v445 = vadd.f32 0.0, %v444
        %v446 = vpop.f32.mrb[0].mxu0
        %447 = vmatprep.mubr.f32.mxu0 0.0
        %448 = vmatmul.mubr.f32.gmra.mrb[0].mxu0 %v306
        %v449 = vpop.f32.mrb[0].mxu0
        %v450 = vadd.f32 0.0, %v449
        %v451 = vpop.f32.mrb[0].mxu0
        %452 = vmatprep.mubr.f32.mxu0 0.0
        %453 = vmatmul.mubr.f32.gmra.mrb[0].mxu0 %v307
        %v454 = vpop.f32.mrb[0].mxu0
        %v455 = vadd.f32 0.0, %v454
        %v456 = vpop.f32.mrb[0].mxu0
        %457 = vmatprep.mubr.f32.mxu0 0.0
        %458 = vmatmul.mubr.f32.gmra.mrb[0].mxu0 %v308
        %v459 = vpop.f32.mrb[0].mxu0
        %v460 = vadd.f32 0.0, %v459
        %v461 = vpop.f32.mrb[0].mxu0
        %462 = vmatprep.mubr.f32.mxu0 0.0
        %463 = vmatmul.mubr.f32.gmra.mrb[0].mxu0 %v309
        %v464 = vpop.f32.mrb[0].mxu0
        %v465 = vadd.f32 0.0, %v464
        %v466 = vpop.f32.mrb[0].mxu0
        %467 = vmatprep.mubr.f32.mxu0 0.0
        %468 = vmatmul.mubr.f32.gmra.mrb[0].mxu0 %v310
        %v469 = vpop.f32.mrb[0].mxu0
        %v470 = vadd.f32 0.0, %v469
        %v471 = vpop.f32.mrb[0].mxu0
        %472 = vdwg.mxu0
        %473 = vmatprep.subr.mxu0 0.0
        %474 = vmatpush1.msra.mxu0 %v279
        %475 = vmatprep.subr.mxu0 0.0
        %476 = vmatpush1.msra.mxu0 %v280
        %477 = vmatprep.subr.mxu0 0.0
        %478 = vmatpush1.msra.mxu0 %v281
        %479 = vmatprep.subr.mxu0 0.0
        %480 = vmatpush1.msra.mxu0 %v282
        %481 = vmatprep.subr.mxu0 0.0
        %482 = vmatpush1.msra.mxu0 %v283
        %483 = vmatprep.subr.mxu0 0.0
        %484 = vmatpush1.msra.mxu0 %v284
        %485 = vmatprep.subr.mxu0 0.0
        %486 = vmatpush1.msra.mxu0 %v285
        %487 = vmatprep.subr.mxu0 0.0
        %488 = vmatpush1.msra.mxu0 %v286
        %489 = vmatprep.subr.mxu0 0.0
        %490 = vmatpush1.msra.mxu0 %v287
        %491 = vmatprep.subr.mxu0 0.0
        %492 = vmatpush1.msra.mxu0 %v288
        %493 = vmatprep.subr.mxu0 0.0
        %494 = vmatpush1.msra.mxu0 %v289
        %495 = vmatprep.subr.mxu0 0.0
        %496 = vmatpush1.msra.mxu0 %v290
        %497 = vmatprep.subr.mxu0 0.0
        %498 = vmatpush1.msra.mxu0 %v291
        %499 = vmatprep.subr.mxu0 0.0
        %500 = vmatpush1.msra.mxu0 %v292
        %501 = vmatprep.subr.mxu0 0.0
        %502 = vmatpush1.msra.mxu0 %v293
        %503 = vmatprep.subr.mxu0 0.0
        %504 = vmatpush1.msra.mxu0 %v294
        %505 = vmatprep.subr.mxu0 0.0
        %506 = vmatpush1.msra.mxu0 0.0
        %507 = vmatprep.subr.mxu0 0.0
        %508 = vmatpush1.msra.mxu0 0.0
        %509 = vmatprep.subr.mxu0 0.0
        %510 = vmatpush1.msra.mxu0 0.0
        %511 = vmatprep.subr.mxu0 0.0
        %512 = vmatpush1.msra.mxu0 0.0
        %513 = vmatprep.subr.mxu0 0.0
        %514 = vmatpush1.msra.mxu0 0.0
        %515 = vmatprep.subr.mxu0 0.0
        %516 = vmatpush1.msra.mxu0 0.0
        %517 = vmatprep.subr.mxu0 0.0
        %518 = vmatpush1.msra.mxu0 0.0
        %519 = vmatprep.subr.mxu0 0.0
        %520 = vmatpush1.msra.mxu0 0.0
        %521 = vmatprep.subr.mxu0 0.0
        %522 = vmatpush1.msra.mxu0 0.0
        %523 = vmatprep.subr.mxu0 0.0
        %524 = vmatpush1.msra.mxu0 0.0
        %525 = vmatprep.subr.mxu0 0.0
        %526 = vmatpush1.msra.mxu0 0.0
        %527 = vmatprep.subr.mxu0 0.0
        %528 = vmatpush1.msra.mxu0 0.0
        %529 = vmatprep.subr.mxu0 0.0
        %530 = vmatpush1.msra.mxu0 0.0
        %531 = vmatprep.subr.mxu0 0.0
        %532 = vmatpush1.msra.mxu0 0.0
        %533 = vmatprep.subr.mxu0 0.0
        %534 = vmatpush1.msra.mxu0 0.0
        %535 = vmatprep.subr.mxu0 0.0
        %536 = vmatpush1.msra.mxu0 0.0
        %537 = vmatprep.mubr.f32.mxu0 0.0
        %538 = vmatmul.mubr.f32.gmra.mrb[0].mxu0 %v263
        %v539 = vpop.f32.mrb[0].mxu0
        %v540 = vadd.f32 %v395, %v539
        %v541 = vpop.f32.mrb[0].mxu0
        %542 = vmatprep.mubr.f32.mxu0 0.0
        %543 = vmatmul.mubr.f32.gmra.mrb[0].mxu0 %v264
        %v544 = vpop.f32.mrb[0].mxu0
        %v545 = vadd.f32 %v400, %v544
        %v546 = vpop.f32.mrb[0].mxu0
        %547 = vmatprep.mubr.f32.mxu0 0.0
        %548 = vmatmul.mubr.f32.gmra.mrb[0].mxu0 %v265
        %v549 = vpop.f32.mrb[0].mxu0
        %v550 = vadd.f32 %v405, %v549
        %v551 = vpop.f32.mrb[0].mxu0
        %552 = vmatprep.mubr.f32.mxu0 0.0
        %553 = vmatmul.mubr.f32.gmra.mrb[0].mxu0 %v266
        %v554 = vpop.f32.mrb[0].mxu0
        %v555 = vadd.f32 %v410, %v554
        %v556 = vpop.f32.mrb[0].mxu0
        %557 = vmatprep.mubr.f32.mxu0 0.0
        %558 = vmatmul.mubr.f32.gmra.mrb[0].mxu0 %v267
        %v559 = vpop.f32.mrb[0].mxu0
        %v560 = vadd.f32 %v415, %v559
        %v561 = vpop.f32.mrb[0].mxu0
        %562 = vmatprep.mubr.f32.mxu0 0.0
        %563 = vmatmul.mubr.f32.gmra.mrb[0].mxu0 %v268
        %v564 = vpop.f32.mrb[0].mxu0
        %v565 = vadd.f32 %v420, %v564
        %v566 = vpop.f32.mrb[0].mxu0
        %567 = vmatprep.mubr.f32.mxu0 0.0
        %568 = vmatmul.mubr.f32.gmra.mrb[0].mxu0 %v269
        %v569 = vpop.f32.mrb[0].mxu0
        %v570 = vadd.f32 %v425, %v569
        %v571 = vpop.f32.mrb[0].mxu0
        %572 = vmatprep.mubr.f32.mxu0 0.0
        %573 = vmatmul.mubr.f32.gmra.mrb[0].mxu0 %v270
        %v574 = vpop.f32.mrb[0].mxu0
        %v575 = vadd.f32 %v430, %v574
        %v576 = vpop.f32.mrb[0].mxu0
        %577 = vmatprep.mubr.f32.mxu0 0.0
        %578 = vmatmul.mubr.f32.gmra.mrb[0].mxu0 %v271
        %v579 = vpop.f32.mrb[0].mxu0
        %v580 = vadd.f32 %v435, %v579
        %v581 = vpop.f32.mrb[0].mxu0
        %582 = vmatprep.mubr.f32.mxu0 0.0
        %583 = vmatmul.mubr.f32.gmra.mrb[0].mxu0 %v272
        %v584 = vpop.f32.mrb[0].mxu0
        %v585 = vadd.f32 %v440, %v584
        %v586 = vpop.f32.mrb[0].mxu0
        %587 = vmatprep.mubr.f32.mxu0 0.0
        %588 = vmatmul.mubr.f32.gmra.mrb[0].mxu0 %v273
        %v589 = vpop.f32.mrb[0].mxu0
        %v590 = vadd.f32 %v445, %v589
        %v591 = vpop.f32.mrb[0].mxu0
        %592 = vmatprep.mubr.f32.mxu0 0.0
        %593 = vmatmul.mubr.f32.gmra.mrb[0].mxu0 %v274
        %v594 = vpop.f32.mrb[0].mxu0
        %v595 = vadd.f32 %v450, %v594
        %v596 = vpop.f32.mrb[0].mxu0
        %597 = vmatprep.mubr.f32.mxu0 0.0
        %598 = vmatmul.mubr.f32.gmra.mrb[0].mxu0 %v275
        %v599 = vpop.f32.mrb[0].mxu0
        %v600 = vadd.f32 %v455, %v599
        %v601 = vpop.f32.mrb[0].mxu0
        %602 = vmatprep.mubr.f32.mxu0 0.0
        %603 = vmatmul.mubr.f32.gmra.mrb[0].mxu0 %v276
        %v604 = vpop.f32.mrb[0].mxu0
        %v605 = vadd.f32 %v460, %v604
        %v606 = vpop.f32.mrb[0].mxu0
        %607 = vmatprep.mubr.f32.mxu0 0.0
        %608 = vmatmul.mubr.f32.gmra.mrb[0].mxu0 %v277
        %v609 = vpop.f32.mrb[0].mxu0
        %v610 = vadd.f32 %v465, %v609
        %v611 = vpop.f32.mrb[0].mxu0
        %612 = vmatprep.mubr.f32.mxu0 0.0
        %613 = vmatmul.mubr.f32.gmra.mrb[0].mxu0 %v278
        %v614 = vpop.f32.mrb[0].mxu0
        %v615 = vadd.f32 %v470, %v614
        %v616 = vpop.f32.mrb[0].mxu0
        %617 = vdwg.mxu0
        %v618 = vld [vmem:[%s262 + $0x2] sm:$0xff]
        %v619 = vld [vmem:[%s262 + $0xa] sm:$0xff]
        %v620 = vld [vmem:[%s262 + $0x12] sm:$0xff]
        %v621 = vld [vmem:[%s262 + $0x1a] sm:$0xff]
        %v622 = vld [vmem:[%s262 + $0x22] sm:$0xff]
        %v623 = vld [vmem:[%s262 + $0x2a] sm:$0xff]
        %v624 = vld [vmem:[%s262 + $0x32] sm:$0xff]
        %v625 = vld [vmem:[%s262 + $0x3a] sm:$0xff]
        %v626 = vld [vmem:[%s262 + $0x42] sm:$0xff]
        %v627 = vld [vmem:[%s262 + $0x4a] sm:$0xff]
        %v628 = vld [vmem:[%s262 + $0x52] sm:$0xff]
        %v629 = vld [vmem:[%s262 + $0x5a] sm:$0xff]
        %v630 = vld [vmem:[%s262 + $0x62] sm:$0xff]
        %v631 = vld [vmem:[%s262 + $0x6a] sm:$0xff]
        %v632 = vld [vmem:[%s262 + $0x72] sm:$0xff]
        %v633 = vld [vmem:[%s262 + $0x7a] sm:$0xff]
        %s634 = scalar_lea.vmem %s2, 256
        %v635 = vld [vmem:[%s634] sm:$0xff]
        %v636 = vld [vmem:[%s634 + $0x8] sm:$0xff]
        %v637 = vld [vmem:[%s634 + $0x10] sm:$0xff]
        %v638 = vld [vmem:[%s634 + $0x18] sm:$0xff]
        %v639 = vld [vmem:[%s634 + $0x20] sm:$0xff]
        %v640 = vld [vmem:[%s634 + $0x28] sm:$0xff]
        %v641 = vld [vmem:[%s634 + $0x30] sm:$0xff]
        %v642 = vld [vmem:[%s634 + $0x38] sm:$0xff]
        %v643 = vld [vmem:[%s634 + $0x40] sm:$0xff]
        %v644 = vld [vmem:[%s634 + $0x48] sm:$0xff]
        %v645 = vld [vmem:[%s634 + $0x50] sm:$0xff]
        %v646 = vld [vmem:[%s634 + $0x58] sm:$0xff]
        %v647 = vld [vmem:[%s634 + $0x60] sm:$0xff]
        %v648 = vld [vmem:[%s634 + $0x68] sm:$0xff]
        %v649 = vld [vmem:[%s634 + $0x70] sm:$0xff]
        %v650 = vld [vmem:[%s634 + $0x78] sm:$0xff]
        %651 = vmatprep.subr.mxu0 0.0
        %652 = vmatpush1.msra.mxu0 %v635
        %653 = vmatprep.subr.mxu0 0.0
        %654 = vmatpush1.msra.mxu0 %v636
        %655 = vmatprep.subr.mxu0 0.0
        %656 = vmatpush1.msra.mxu0 %v637
        %657 = vmatprep.subr.mxu0 0.0
        %658 = vmatpush1.msra.mxu0 %v638
        %659 = vmatprep.subr.mxu0 0.0
        %660 = vmatpush1.msra.mxu0 %v639
        %661 = vmatprep.subr.mxu0 0.0
        %662 = vmatpush1.msra.mxu0 %v640
        %663 = vmatprep.subr.mxu0 0.0
        %664 = vmatpush1.msra.mxu0 %v641
        %665 = vmatprep.subr.mxu0 0.0
        %666 = vmatpush1.msra.mxu0 %v642
        %667 = vmatprep.subr.mxu0 0.0
        %668 = vmatpush1.msra.mxu0 %v643
        %669 = vmatprep.subr.mxu0 0.0
        %670 = vmatpush1.msra.mxu0 %v644
        %671 = vmatprep.subr.mxu0 0.0
        %672 = vmatpush1.msra.mxu0 %v645
        %673 = vmatprep.subr.mxu0 0.0
        %674 = vmatpush1.msra.mxu0 %v646
        %675 = vmatprep.subr.mxu0 0.0
        %676 = vmatpush1.msra.mxu0 %v647
        %677 = vmatprep.subr.mxu0 0.0
        %678 = vmatpush1.msra.mxu0 %v648
        %679 = vmatprep.subr.mxu0 0.0
        %680 = vmatpush1.msra.mxu0 %v649
        %681 = vmatprep.subr.mxu0 0.0
        %682 = vmatpush1.msra.mxu0 %v650
        %683 = vmatprep.subr.mxu0 0.0
        %684 = vmatpush1.msra.mxu0 0.0
        %685 = vmatprep.subr.mxu0 0.0
        %686 = vmatpush1.msra.mxu0 0.0
        %687 = vmatprep.subr.mxu0 0.0
        %688 = vmatpush1.msra.mxu0 0.0
        %689 = vmatprep.subr.mxu0 0.0
        %690 = vmatpush1.msra.mxu0 0.0
        %691 = vmatprep.subr.mxu0 0.0
        %692 = vmatpush1.msra.mxu0 0.0
        %693 = vmatprep.subr.mxu0 0.0
        %694 = vmatpush1.msra.mxu0 0.0
        %695 = vmatprep.subr.mxu0 0.0
        %696 = vmatpush1.msra.mxu0 0.0
        %697 = vmatprep.subr.mxu0 0.0
        %698 = vmatpush1.msra.mxu0 0.0
        %699 = vmatprep.subr.mxu0 0.0
        %700 = vmatpush1.msra.mxu0 0.0
        %701 = vmatprep.subr.mxu0 0.0
        %702 = vmatpush1.msra.mxu0 0.0
        %703 = vmatprep.subr.mxu0 0.0
        %704 = vmatpush1.msra.mxu0 0.0
        %705 = vmatprep.subr.mxu0 0.0
        %706 = vmatpush1.msra.mxu0 0.0
        %707 = vmatprep.subr.mxu0 0.0
        %708 = vmatpush1.msra.mxu0 0.0
        %709 = vmatprep.subr.mxu0 0.0
        %710 = vmatpush1.msra.mxu0 0.0
        %711 = vmatprep.subr.mxu0 0.0
        %712 = vmatpush1.msra.mxu0 0.0
        %713 = vmatprep.subr.mxu0 0.0
        %714 = vmatpush1.msra.mxu0 0.0
        %715 = vmatprep.mubr.f32.mxu0 0.0
        %716 = vmatmul.mubr.f32.gmra.mrb[0].mxu0 %v618
        %v717 = vpop.f32.mrb[0].mxu0
        %v718 = vadd.f32 0.0, %v717
        %v719 = vpop.f32.mrb[0].mxu0
        %720 = vmatprep.mubr.f32.mxu0 0.0
        %721 = vmatmul.mubr.f32.gmra.mrb[0].mxu0 %v619
        %v722 = vpop.f32.mrb[0].mxu0
        %v723 = vadd.f32 0.0, %v722
        %v724 = vpop.f32.mrb[0].mxu0
        %725 = vmatprep.mubr.f32.mxu0 0.0
        %726 = vmatmul.mubr.f32.gmra.mrb[0].mxu0 %v620
        %v727 = vpop.f32.mrb[0].mxu0
        %v728 = vadd.f32 0.0, %v727
        %v729 = vpop.f32.mrb[0].mxu0
        %730 = vmatprep.mubr.f32.mxu0 0.0
        %731 = vmatmul.mubr.f32.gmra.mrb[0].mxu0 %v621
        %v732 = vpop.f32.mrb[0].mxu0
        %v733 = vadd.f32 0.0, %v732
        %v734 = vpop.f32.mrb[0].mxu0
        %735 = vmatprep.mubr.f32.mxu0 0.0
        %736 = vmatmul.mubr.f32.gmra.mrb[0].mxu0 %v622
        %v737 = vpop.f32.mrb[0].mxu0
        %v738 = vadd.f32 0.0, %v737
        %v739 = vpop.f32.mrb[0].mxu0
        %740 = vmatprep.mubr.f32.mxu0 0.0
        %741 = vmatmul.mubr.f32.gmra.mrb[0].mxu0 %v623
        %v742 = vpop.f32.mrb[0].mxu0
        %v743 = vadd.f32 0.0, %v742
        %v744 = vpop.f32.mrb[0].mxu0
        %745 = vmatprep.mubr.f32.mxu0 0.0
        %746 = vmatmul.mubr.f32.gmra.mrb[0].mxu0 %v624
        %v747 = vpop.f32.mrb[0].mxu0
        %v748 = vadd.f32 0.0, %v747
        %v749 = vpop.f32.mrb[0].mxu0
        %750 = vmatprep.mubr.f32.mxu0 0.0
        %751 = vmatmul.mubr.f32.gmra.mrb[0].mxu0 %v625
        %v752 = vpop.f32.mrb[0].mxu0
        %v753 = vadd.f32 0.0, %v752
        %v754 = vpop.f32.mrb[0].mxu0
        %755 = vmatprep.mubr.f32.mxu0 0.0
        %756 = vmatmul.mubr.f32.gmra.mrb[0].mxu0 %v626
        %v757 = vpop.f32.mrb[0].mxu0
        %v758 = vadd.f32 0.0, %v757
        %v759 = vpop.f32.mrb[0].mxu0
        %760 = vmatprep.mubr.f32.mxu0 0.0
        %761 = vmatmul.mubr.f32.gmra.mrb[0].mxu0 %v627
        %v762 = vpop.f32.mrb[0].mxu0
        %v763 = vadd.f32 0.0, %v762
        %v764 = vpop.f32.mrb[0].mxu0
        %765 = vmatprep.mubr.f32.mxu0 0.0
        %766 = vmatmul.mubr.f32.gmra.mrb[0].mxu0 %v628
        %v767 = vpop.f32.mrb[0].mxu0
        %v768 = vadd.f32 0.0, %v767
        %v769 = vpop.f32.mrb[0].mxu0
        %770 = vmatprep.mubr.f32.mxu0 0.0
        %771 = vmatmul.mubr.f32.gmra.mrb[0].mxu0 %v629
        %v772 = vpop.f32.mrb[0].mxu0
        %v773 = vadd.f32 0.0, %v772
        %v774 = vpop.f32.mrb[0].mxu0
        %775 = vmatprep.mubr.f32.mxu0 0.0
        %776 = vmatmul.mubr.f32.gmra.mrb[0].mxu0 %v630
        %v777 = vpop.f32.mrb[0].mxu0
        %v778 = vadd.f32 0.0, %v777
        %v779 = vpop.f32.mrb[0].mxu0
        %780 = vmatprep.mubr.f32.mxu0 0.0
        %781 = vmatmul.mubr.f32.gmra.mrb[0].mxu0 %v631
        %v782 = vpop.f32.mrb[0].mxu0
        %v783 = vadd.f32 0.0, %v782
        %v784 = vpop.f32.mrb[0].mxu0
        %785 = vmatprep.mubr.f32.mxu0 0.0
        %786 = vmatmul.mubr.f32.gmra.mrb[0].mxu0 %v632
        %v787 = vpop.f32.mrb[0].mxu0
        %v788 = vadd.f32 0.0, %v787
        %v789 = vpop.f32.mrb[0].mxu0
        %790 = vmatprep.mubr.f32.mxu0 0.0
        %791 = vmatmul.mubr.f32.gmra.mrb[0].mxu0 %v633
        %v792 = vpop.f32.mrb[0].mxu0
        %v793 = vadd.f32 0.0, %v792
        %v794 = vpop.f32.mrb[0].mxu0
        %795 = vdwg.mxu0
        %v796 = vadd.f32 %v540, %v718
        %v797 = vadd.f32 %v545, %v723
        %v798 = vadd.f32 %v550, %v728
        %v799 = vadd.f32 %v555, %v733
        %v800 = vadd.f32 %v560, %v738
        %v801 = vadd.f32 %v565, %v743
        %v802 = vadd.f32 %v570, %v748
        %v803 = vadd.f32 %v575, %v753
        %v804 = vadd.f32 %v580, %v758
        %v805 = vadd.f32 %v585, %v763
        %v806 = vadd.f32 %v590, %v768
        %v807 = vadd.f32 %v595, %v773
        %v808 = vadd.f32 %v600, %v778
        %v809 = vadd.f32 %v605, %v783
        %v810 = vadd.f32 %v610, %v788
        %v811 = vadd.f32 %v615, %v793
        %v812 = vld [vmem:[%s262 + $0x3] sm:$0xff]
        %v813 = vld [vmem:[%s262 + $0xb] sm:$0xff]
        %v814 = vld [vmem:[%s262 + $0x13] sm:$0xff]
        %v815 = vld [vmem:[%s262 + $0x1b] sm:$0xff]
        %v816 = vld [vmem:[%s262 + $0x23] sm:$0xff]
        %v817 = vld [vmem:[%s262 + $0x2b] sm:$0xff]
        %v818 = vld [vmem:[%s262 + $0x33] sm:$0xff]
        %v819 = vld [vmem:[%s262 + $0x3b] sm:$0xff]
        %v820 = vld [vmem:[%s262 + $0x43] sm:$0xff]
        %v821 = vld [vmem:[%s262 + $0x4b] sm:$0xff]
        %v822 = vld [vmem:[%s262 + $0x53] sm:$0xff]
        %v823 = vld [vmem:[%s262 + $0x5b] sm:$0xff]
        %v824 = vld [vmem:[%s262 + $0x63] sm:$0xff]
        %v825 = vld [vmem:[%s262 + $0x6b] sm:$0xff]
        %v826 = vld [vmem:[%s262 + $0x73] sm:$0xff]
        %v827 = vld [vmem:[%s262 + $0x7b] sm:$0xff]
        %s828 = scalar_lea.vmem %s2, 384
        %v829 = vld [vmem:[%s828] sm:$0xff]
        %v830 = vld [vmem:[%s828 + $0x8] sm:$0xff]
        %v831 = vld [vmem:[%s828 + $0x10] sm:$0xff]
        %v832 = vld [vmem:[%s828 + $0x18] sm:$0xff]
        %v833 = vld [vmem:[%s828 + $0x20] sm:$0xff]
        %v834 = vld [vmem:[%s828 + $0x28] sm:$0xff]
        %v835 = vld [vmem:[%s828 + $0x30] sm:$0xff]
        %v836 = vld [vmem:[%s828 + $0x38] sm:$0xff]
        %v837 = vld [vmem:[%s828 + $0x40] sm:$0xff]
        %v838 = vld [vmem:[%s828 + $0x48] sm:$0xff]
        %v839 = vld [vmem:[%s828 + $0x50] sm:$0xff]
        %v840 = vld [vmem:[%s828 + $0x58] sm:$0xff]
        %v841 = vld [vmem:[%s828 + $0x60] sm:$0xff]
        %v842 = vld [vmem:[%s828 + $0x68] sm:$0xff]
        %v843 = vld [vmem:[%s828 + $0x70] sm:$0xff]
        %v844 = vld [vmem:[%s828 + $0x78] sm:$0xff]
        %845 = vmatprep.subr.mxu0 0.0
        %846 = vmatpush1.msra.mxu0 %v829
        %847 = vmatprep.subr.mxu0 0.0
        %848 = vmatpush1.msra.mxu0 %v830
        %849 = vmatprep.subr.mxu0 0.0
        %850 = vmatpush1.msra.mxu0 %v831
        %851 = vmatprep.subr.mxu0 0.0
        %852 = vmatpush1.msra.mxu0 %v832
        %853 = vmatprep.subr.mxu0 0.0
        %854 = vmatpush1.msra.mxu0 %v833
        %855 = vmatprep.subr.mxu0 0.0
        %856 = vmatpush1.msra.mxu0 %v834
        %857 = vmatprep.subr.mxu0 0.0
        %858 = vmatpush1.msra.mxu0 %v835
        %859 = vmatprep.subr.mxu0 0.0
        %860 = vmatpush1.msra.mxu0 %v836
        %861 = vmatprep.subr.mxu0 0.0
        %862 = vmatpush1.msra.mxu0 %v837
        %863 = vmatprep.subr.mxu0 0.0
        %864 = vmatpush1.msra.mxu0 %v838
        %865 = vmatprep.subr.mxu0 0.0
        %866 = vmatpush1.msra.mxu0 %v839
        %867 = vmatprep.subr.mxu0 0.0
        %868 = vmatpush1.msra.mxu0 %v840
        %869 = vmatprep.subr.mxu0 0.0
        %870 = vmatpush1.msra.mxu0 %v841
        %871 = vmatprep.subr.mxu0 0.0
        %872 = vmatpush1.msra.mxu0 %v842
        %873 = vmatprep.subr.mxu0 0.0
        %874 = vmatpush1.msra.mxu0 %v843
        %875 = vmatprep.subr.mxu0 0.0
        %876 = vmatpush1.msra.mxu0 %v844
        %877 = vmatprep.subr.mxu0 0.0
        %878 = vmatpush1.msra.mxu0 0.0
        %879 = vmatprep.subr.mxu0 0.0
        %880 = vmatpush1.msra.mxu0 0.0
        %881 = vmatprep.subr.mxu0 0.0
        %882 = vmatpush1.msra.mxu0 0.0
        %883 = vmatprep.subr.mxu0 0.0
        %884 = vmatpush1.msra.mxu0 0.0
        %885 = vmatprep.subr.mxu0 0.0
        %886 = vmatpush1.msra.mxu0 0.0
        %887 = vmatprep.subr.mxu0 0.0
        %888 = vmatpush1.msra.mxu0 0.0
        %889 = vmatprep.subr.mxu0 0.0
        %890 = vmatpush1.msra.mxu0 0.0
        %891 = vmatprep.subr.mxu0 0.0
        %892 = vmatpush1.msra.mxu0 0.0
        %893 = vmatprep.subr.mxu0 0.0
        %894 = vmatpush1.msra.mxu0 0.0
        %895 = vmatprep.subr.mxu0 0.0
        %896 = vmatpush1.msra.mxu0 0.0
        %897 = vmatprep.subr.mxu0 0.0
        %898 = vmatpush1.msra.mxu0 0.0
        %899 = vmatprep.subr.mxu0 0.0
        %900 = vmatpush1.msra.mxu0 0.0
        %901 = vmatprep.subr.mxu0 0.0
        %902 = vmatpush1.msra.mxu0 0.0
        %903 = vmatprep.subr.mxu0 0.0
        %904 = vmatpush1.msra.mxu0 0.0
        %905 = vmatprep.subr.mxu0 0.0
        %906 = vmatpush1.msra.mxu0 0.0
        %907 = vmatprep.subr.mxu0 0.0
        %908 = vmatpush1.msra.mxu0 0.0
        %909 = vmatprep.mubr.f32.mxu0 0.0
        %910 = vmatmul.mubr.f32.gmra.mrb[0].mxu0 %v812
        %v911 = vpop.f32.mrb[0].mxu0
        %v912 = vadd.f32 0.0, %v911
        %v913 = vpop.f32.mrb[0].mxu0
        %914 = vmatprep.mubr.f32.mxu0 0.0
        %915 = vmatmul.mubr.f32.gmra.mrb[0].mxu0 %v813
        %v916 = vpop.f32.mrb[0].mxu0
        %v917 = vadd.f32 0.0, %v916
        %v918 = vpop.f32.mrb[0].mxu0
        %919 = vmatprep.mubr.f32.mxu0 0.0
        %920 = vmatmul.mubr.f32.gmra.mrb[0].mxu0 %v814
        %v921 = vpop.f32.mrb[0].mxu0
        %v922 = vadd.f32 0.0, %v921
        %v923 = vpop.f32.mrb[0].mxu0
        %924 = vmatprep.mubr.f32.mxu0 0.0
        %925 = vmatmul.mubr.f32.gmra.mrb[0].mxu0 %v815
        %v926 = vpop.f32.mrb[0].mxu0
        %v927 = vadd.f32 0.0, %v926
        %v928 = vpop.f32.mrb[0].mxu0
        %929 = vmatprep.mubr.f32.mxu0 0.0
        %930 = vmatmul.mubr.f32.gmra.mrb[0].mxu0 %v816
        %v931 = vpop.f32.mrb[0].mxu0
        %v932 = vadd.f32 0.0, %v931
        %v933 = vpop.f32.mrb[0].mxu0
        %934 = vmatprep.mubr.f32.mxu0 0.0
        %935 = vmatmul.mubr.f32.gmra.mrb[0].mxu0 %v817
        %v936 = vpop.f32.mrb[0].mxu0
        %v937 = vadd.f32 0.0, %v936
        %v938 = vpop.f32.mrb[0].mxu0
        %939 = vmatprep.mubr.f32.mxu0 0.0
        %940 = vmatmul.mubr.f32.gmra.mrb[0].mxu0 %v818
        %v941 = vpop.f32.mrb[0].mxu0
        %v942 = vadd.f32 0.0, %v941
        %v943 = vpop.f32.mrb[0].mxu0
        %944 = vmatprep.mubr.f32.mxu0 0.0
        %945 = vmatmul.mubr.f32.gmra.mrb[0].mxu0 %v819
        %v946 = vpop.f32.mrb[0].mxu0
        %v947 = vadd.f32 0.0, %v946
        %v948 = vpop.f32.mrb[0].mxu0
        %949 = vmatprep.mubr.f32.mxu0 0.0
        %950 = vmatmul.mubr.f32.gmra.mrb[0].mxu0 %v820
        %v951 = vpop.f32.mrb[0].mxu0
        %v952 = vadd.f32 0.0, %v951
        %v953 = vpop.f32.mrb[0].mxu0
        %954 = vmatprep.mubr.f32.mxu0 0.0
        %955 = vmatmul.mubr.f32.gmra.mrb[0].mxu0 %v821
        %v956 = vpop.f32.mrb[0].mxu0
        %v957 = vadd.f32 0.0, %v956
        %v958 = vpop.f32.mrb[0].mxu0
        %959 = vmatprep.mubr.f32.mxu0 0.0
        %960 = vmatmul.mubr.f32.gmra.mrb[0].mxu0 %v822
        %v961 = vpop.f32.mrb[0].mxu0
        %v962 = vadd.f32 0.0, %v961
        %v963 = vpop.f32.mrb[0].mxu0
        %964 = vmatprep.mubr.f32.mxu0 0.0
        %965 = vmatmul.mubr.f32.gmra.mrb[0].mxu0 %v823
        %v966 = vpop.f32.mrb[0].mxu0
        %v967 = vadd.f32 0.0, %v966
        %v968 = vpop.f32.mrb[0].mxu0
        %969 = vmatprep.mubr.f32.mxu0 0.0
        %970 = vmatmul.mubr.f32.gmra.mrb[0].mxu0 %v824
        %v971 = vpop.f32.mrb[0].mxu0
        %v972 = vadd.f32 0.0, %v971
        %v973 = vpop.f32.mrb[0].mxu0
        %974 = vmatprep.mubr.f32.mxu0 0.0
        %975 = vmatmul.mubr.f32.gmra.mrb[0].mxu0 %v825
        %v976 = vpop.f32.mrb[0].mxu0
        %v977 = vadd.f32 0.0, %v976
        %v978 = vpop.f32.mrb[0].mxu0
        %979 = vmatprep.mubr.f32.mxu0 0.0
        %980 = vmatmul.mubr.f32.gmra.mrb[0].mxu0 %v826
        %v981 = vpop.f32.mrb[0].mxu0
        %v982 = vadd.f32 0.0, %v981
        %v983 = vpop.f32.mrb[0].mxu0
        %984 = vmatprep.mubr.f32.mxu0 0.0
        %985 = vmatmul.mubr.f32.gmra.mrb[0].mxu0 %v827
        %v986 = vpop.f32.mrb[0].mxu0
        %v987 = vadd.f32 0.0, %v986
        %v988 = vpop.f32.mrb[0].mxu0
        %989 = vdwg.mxu0
        %v990 = vadd.f32 %v796, %v912
        %v991 = vadd.f32 %v797, %v917
        %v992 = vadd.f32 %v798, %v922
        %v993 = vadd.f32 %v799, %v927
        %v994 = vadd.f32 %v800, %v932
        %v995 = vadd.f32 %v801, %v937
        %v996 = vadd.f32 %v802, %v942
        %v997 = vadd.f32 %v803, %v947
        %v998 = vadd.f32 %v804, %v952
        %v999 = vadd.f32 %v805, %v957
        %v1000 = vadd.f32 %v806, %v962
        %v1001 = vadd.f32 %v807, %v967
        %v1002 = vadd.f32 %v808, %v972
        %v1003 = vadd.f32 %v809, %v977
        %v1004 = vadd.f32 %v810, %v982
        %v1005 = vadd.f32 %v811, %v987
        %v1006 = vld [vmem:[%s262 + $0x4] sm:$0xff]
        %v1007 = vld [vmem:[%s262 + $0xc] sm:$0xff]
        %v1008 = vld [vmem:[%s262 + $0x14] sm:$0xff]
        %v1009 = vld [vmem:[%s262 + $0x1c] sm:$0xff]
        %v1010 = vld [vmem:[%s262 + $0x24] sm:$0xff]
        %v1011 = vld [vmem:[%s262 + $0x2c] sm:$0xff]
        %v1012 = vld [vmem:[%s262 + $0x34] sm:$0xff]
        %v1013 = vld [vmem:[%s262 + $0x3c] sm:$0xff]
        %v1014 = vld [vmem:[%s262 + $0x44] sm:$0xff]
        %v1015 = vld [vmem:[%s262 + $0x4c] sm:$0xff]
        %v1016 = vld [vmem:[%s262 + $0x54] sm:$0xff]
        %v1017 = vld [vmem:[%s262 + $0x5c] sm:$0xff]
        %v1018 = vld [vmem:[%s262 + $0x64] sm:$0xff]
        %v1019 = vld [vmem:[%s262 + $0x6c] sm:$0xff]
        %v1020 = vld [vmem:[%s262 + $0x74] sm:$0xff]
        %v1021 = vld [vmem:[%s262 + $0x7c] sm:$0xff]
        %s1022 = scalar_lea.vmem %s2, 512
        %v1023 = vld [vmem:[%s1022] sm:$0xff]
        %v1024 = vld [vmem:[%s1022 + $0x8] sm:$0xff]
        %v1025 = vld [vmem:[%s1022 + $0x10] sm:$0xff]
        %v1026 = vld [vmem:[%s1022 + $0x18] sm:$0xff]
        %v1027 = vld [vmem:[%s1022 + $0x20] sm:$0xff]
        %v1028 = vld [vmem:[%s1022 + $0x28] sm:$0xff]
        %v1029 = vld [vmem:[%s1022 + $0x30] sm:$0xff]
        %v1030 = vld [vmem:[%s1022 + $0x38] sm:$0xff]
        %v1031 = vld [vmem:[%s1022 + $0x40] sm:$0xff]
        %v1032 = vld [vmem:[%s1022 + $0x48] sm:$0xff]
        %v1033 = vld [vmem:[%s1022 + $0x50] sm:$0xff]
        %v1034 = vld [vmem:[%s1022 + $0x58] sm:$0xff]
        %v1035 = vld [vmem:[%s1022 + $0x60] sm:$0xff]
        %v1036 = vld [vmem:[%s1022 + $0x68] sm:$0xff]
        %v1037 = vld [vmem:[%s1022 + $0x70] sm:$0xff]
        %v1038 = vld [vmem:[%s1022 + $0x78] sm:$0xff]
        %1039 = vmatprep.subr.mxu0 0.0
        %1040 = vmatpush1.msra.mxu0 %v1023
        %1041 = vmatprep.subr.mxu0 0.0
        %1042 = vmatpush1.msra.mxu0 %v1024
        %1043 = vmatprep.subr.mxu0 0.0
        %1044 = vmatpush1.msra.mxu0 %v1025
        %1045 = vmatprep.subr.mxu0 0.0
        %1046 = vmatpush1.msra.mxu0 %v1026
        %1047 = vmatprep.subr.mxu0 0.0
        %1048 = vmatpush1.msra.mxu0 %v1027
        %1049 = vmatprep.subr.mxu0 0.0
        %1050 = vmatpush1.msra.mxu0 %v1028
        %1051 = vmatprep.subr.mxu0 0.0
        %1052 = vmatpush1.msra.mxu0 %v1029
        %1053 = vmatprep.subr.mxu0 0.0
        %1054 = vmatpush1.msra.mxu0 %v1030
        %1055 = vmatprep.subr.mxu0 0.0
        %1056 = vmatpush1.msra.mxu0 %v1031
        %1057 = vmatprep.subr.mxu0 0.0
        %1058 = vmatpush1.msra.mxu0 %v1032
        %1059 = vmatprep.subr.mxu0 0.0
        %1060 = vmatpush1.msra.mxu0 %v1033
        %1061 = vmatprep.subr.mxu0 0.0
        %1062 = vmatpush1.msra.mxu0 %v1034
        %1063 = vmatprep.subr.mxu0 0.0
        %1064 = vmatpush1.msra.mxu0 %v1035
        %1065 = vmatprep.subr.mxu0 0.0
        %1066 = vmatpush1.msra.mxu0 %v1036
        %1067 = vmatprep.subr.mxu0 0.0
        %1068 = vmatpush1.msra.mxu0 %v1037
        %1069 = vmatprep.subr.mxu0 0.0
        %1070 = vmatpush1.msra.mxu0 %v1038
        %1071 = vmatprep.subr.mxu0 0.0
        %1072 = vmatpush1.msra.mxu0 0.0
        %1073 = vmatprep.subr.mxu0 0.0
        %1074 = vmatpush1.msra.mxu0 0.0
        %1075 = vmatprep.subr.mxu0 0.0
        %1076 = vmatpush1.msra.mxu0 0.0
        %1077 = vmatprep.subr.mxu0 0.0
        %1078 = vmatpush1.msra.mxu0 0.0
        %1079 = vmatprep.subr.mxu0 0.0
        %1080 = vmatpush1.msra.mxu0 0.0
        %1081 = vmatprep.subr.mxu0 0.0
        %1082 = vmatpush1.msra.mxu0 0.0
        %1083 = vmatprep.subr.mxu0 0.0
        %1084 = vmatpush1.msra.mxu0 0.0
        %1085 = vmatprep.subr.mxu0 0.0
        %1086 = vmatpush1.msra.mxu0 0.0
        %1087 = vmatprep.subr.mxu0 0.0
        %1088 = vmatpush1.msra.mxu0 0.0
        %1089 = vmatprep.subr.mxu0 0.0
        %1090 = vmatpush1.msra.mxu0 0.0
        %1091 = vmatprep.subr.mxu0 0.0
        %1092 = vmatpush1.msra.mxu0 0.0
        %1093 = vmatprep.subr.mxu0 0.0
        %1094 = vmatpush1.msra.mxu0 0.0
        %1095 = vmatprep.subr.mxu0 0.0
        %1096 = vmatpush1.msra.mxu0 0.0
        %1097 = vmatprep.subr.mxu0 0.0
        %1098 = vmatpush1.msra.mxu0 0.0
        %1099 = vmatprep.subr.mxu0 0.0
        %1100 = vmatpush1.msra.mxu0 0.0
        %1101 = vmatprep.subr.mxu0 0.0
        %1102 = vmatpush1.msra.mxu0 0.0
        %1103 = vmatprep.mubr.f32.mxu0 0.0
        %1104 = vmatmul.mubr.f32.gmra.mrb[0].mxu0 %v1006
        %v1105 = vpop.f32.mrb[0].mxu0
        %v1106 = vadd.f32 0.0, %v1105
        %v1107 = vpop.f32.mrb[0].mxu0
        %1108 = vmatprep.mubr.f32.mxu0 0.0
        %1109 = vmatmul.mubr.f32.gmra.mrb[0].mxu0 %v1007
        %v1110 = vpop.f32.mrb[0].mxu0
        %v1111 = vadd.f32 0.0, %v1110
        %v1112 = vpop.f32.mrb[0].mxu0
        %1113 = vmatprep.mubr.f32.mxu0 0.0
        %1114 = vmatmul.mubr.f32.gmra.mrb[0].mxu0 %v1008
        %v1115 = vpop.f32.mrb[0].mxu0
        %v1116 = vadd.f32 0.0, %v1115
        %v1117 = vpop.f32.mrb[0].mxu0
        %1118 = vmatprep.mubr.f32.mxu0 0.0
        %1119 = vmatmul.mubr.f32.gmra.mrb[0].mxu0 %v1009
        %v1120 = vpop.f32.mrb[0].mxu0
        %v1121 = vadd.f32 0.0, %v1120
        %v1122 = vpop.f32.mrb[0].mxu0
        %1123 = vmatprep.mubr.f32.mxu0 0.0
        %1124 = vmatmul.mubr.f32.gmra.mrb[0].mxu0 %v1010
        %v1125 = vpop.f32.mrb[0].mxu0
        %v1126 = vadd.f32 0.0, %v1125
        %v1127 = vpop.f32.mrb[0].mxu0
        %1128 = vmatprep.mubr.f32.mxu0 0.0
        %1129 = vmatmul.mubr.f32.gmra.mrb[0].mxu0 %v1011
        %v1130 = vpop.f32.mrb[0].mxu0
        %v1131 = vadd.f32 0.0, %v1130
        %v1132 = vpop.f32.mrb[0].mxu0
        %1133 = vmatprep.mubr.f32.mxu0 0.0
        %1134 = vmatmul.mubr.f32.gmra.mrb[0].mxu0 %v1012
        %v1135 = vpop.f32.mrb[0].mxu0
        %v1136 = vadd.f32 0.0, %v1135
        %v1137 = vpop.f32.mrb[0].mxu0
        %1138 = vmatprep.mubr.f32.mxu0 0.0
        %1139 = vmatmul.mubr.f32.gmra.mrb[0].mxu0 %v1013
        %v1140 = vpop.f32.mrb[0].mxu0
        %v1141 = vadd.f32 0.0, %v1140
        %v1142 = vpop.f32.mrb[0].mxu0
        %1143 = vmatprep.mubr.f32.mxu0 0.0
        %1144 = vmatmul.mubr.f32.gmra.mrb[0].mxu0 %v1014
        %v1145 = vpop.f32.mrb[0].mxu0
        %v1146 = vadd.f32 0.0, %v1145
        %v1147 = vpop.f32.mrb[0].mxu0
        %1148 = vmatprep.mubr.f32.mxu0 0.0
        %1149 = vmatmul.mubr.f32.gmra.mrb[0].mxu0 %v1015
        %v1150 = vpop.f32.mrb[0].mxu0
        %v1151 = vadd.f32 0.0, %v1150
        %v1152 = vpop.f32.mrb[0].mxu0
        %1153 = vmatprep.mubr.f32.mxu0 0.0
        %1154 = vmatmul.mubr.f32.gmra.mrb[0].mxu0 %v1016
        %v1155 = vpop.f32.mrb[0].mxu0
        %v1156 = vadd.f32 0.0, %v1155
        %v1157 = vpop.f32.mrb[0].mxu0
        %1158 = vmatprep.mubr.f32.mxu0 0.0
        %1159 = vmatmul.mubr.f32.gmra.mrb[0].mxu0 %v1017
        %v1160 = vpop.f32.mrb[0].mxu0
        %v1161 = vadd.f32 0.0, %v1160
        %v1162 = vpop.f32.mrb[0].mxu0
        %1163 = vmatprep.mubr.f32.mxu0 0.0
        %1164 = vmatmul.mubr.f32.gmra.mrb[0].mxu0 %v1018
        %v1165 = vpop.f32.mrb[0].mxu0
        %v1166 = vadd.f32 0.0, %v1165
        %v1167 = vpop.f32.mrb[0].mxu0
        %1168 = vmatprep.mubr.f32.mxu0 0.0
        %1169 = vmatmul.mubr.f32.gmra.mrb[0].mxu0 %v1019
        %v1170 = vpop.f32.mrb[0].mxu0
        %v1171 = vadd.f32 0.0, %v1170
        %v1172 = vpop.f32.mrb[0].mxu0
        %1173 = vmatprep.mubr.f32.mxu0 0.0
        %1174 = vmatmul.mubr.f32.gmra.mrb[0].mxu0 %v1020
        %v1175 = vpop.f32.mrb[0].mxu0
        %v1176 = vadd.f32 0.0, %v1175
        %v1177 = vpop.f32.mrb[0].mxu0
        %1178 = vmatprep.mubr.f32.mxu0 0.0
        %1179 = vmatmul.mubr.f32.gmra.mrb[0].mxu0 %v1021
        %v1180 = vpop.f32.mrb[0].mxu0
        %v1181 = vadd.f32 0.0, %v1180
        %v1182 = vpop.f32.mrb[0].mxu0
        %1183 = vdwg.mxu0
        %v1184 = vadd.f32 %v990, %v1106
        %v1185 = vadd.f32 %v991, %v1111
        %v1186 = vadd.f32 %v992, %v1116
        %v1187 = vadd.f32 %v993, %v1121
        %v1188 = vadd.f32 %v994, %v1126
        %v1189 = vadd.f32 %v995, %v1131
        %v1190 = vadd.f32 %v996, %v1136
        %v1191 = vadd.f32 %v997, %v1141
        %v1192 = vadd.f32 %v998, %v1146
        %v1193 = vadd.f32 %v999, %v1151
        %v1194 = vadd.f32 %v1000, %v1156
        %v1195 = vadd.f32 %v1001, %v1161
        %v1196 = vadd.f32 %v1002, %v1166
        %v1197 = vadd.f32 %v1003, %v1171
        %v1198 = vadd.f32 %v1004, %v1176
        %v1199 = vadd.f32 %v1005, %v1181
        %v1200 = vld [vmem:[%s262 + $0x5] sm:$0xff]
        %v1201 = vld [vmem:[%s262 + $0xd] sm:$0xff]
        %v1202 = vld [vmem:[%s262 + $0x15] sm:$0xff]
        %v1203 = vld [vmem:[%s262 + $0x1d] sm:$0xff]
        %v1204 = vld [vmem:[%s262 + $0x25] sm:$0xff]
        %v1205 = vld [vmem:[%s262 + $0x2d] sm:$0xff]
        %v1206 = vld [vmem:[%s262 + $0x35] sm:$0xff]
        %v1207 = vld [vmem:[%s262 + $0x3d] sm:$0xff]
        %v1208 = vld [vmem:[%s262 + $0x45] sm:$0xff]
        %v1209 = vld [vmem:[%s262 + $0x4d] sm:$0xff]
        %v1210 = vld [vmem:[%s262 + $0x55] sm:$0xff]
        %v1211 = vld [vmem:[%s262 + $0x5d] sm:$0xff]
        %v1212 = vld [vmem:[%s262 + $0x65] sm:$0xff]
        %v1213 = vld [vmem:[%s262 + $0x6d] sm:$0xff]
        %v1214 = vld [vmem:[%s262 + $0x75] sm:$0xff]
        %v1215 = vld [vmem:[%s262 + $0x7d] sm:$0xff]
        %s1216 = scalar_lea.vmem %s2, 640
        %v1217 = vld [vmem:[%s1216] sm:$0xff]
        %v1218 = vld [vmem:[%s1216 + $0x8] sm:$0xff]
        %v1219 = vld [vmem:[%s1216 + $0x10] sm:$0xff]
        %v1220 = vld [vmem:[%s1216 + $0x18] sm:$0xff]
        %v1221 = vld [vmem:[%s1216 + $0x20] sm:$0xff]
        %v1222 = vld [vmem:[%s1216 + $0x28] sm:$0xff]
        %v1223 = vld [vmem:[%s1216 + $0x30] sm:$0xff]
        %v1224 = vld [vmem:[%s1216 + $0x38] sm:$0xff]
        %v1225 = vld [vmem:[%s1216 + $0x40] sm:$0xff]
        %v1226 = vld [vmem:[%s1216 + $0x48] sm:$0xff]
        %v1227 = vld [vmem:[%s1216 + $0x50] sm:$0xff]
        %v1228 = vld [vmem:[%s1216 + $0x58] sm:$0xff]
        %v1229 = vld [vmem:[%s1216 + $0x60] sm:$0xff]
        %v1230 = vld [vmem:[%s1216 + $0x68] sm:$0xff]
        %v1231 = vld [vmem:[%s1216 + $0x70] sm:$0xff]
        %v1232 = vld [vmem:[%s1216 + $0x78] sm:$0xff]
        %1233 = vmatprep.subr.mxu0 0.0
        %1234 = vmatpush1.msra.mxu0 %v1217
        %1235 = vmatprep.subr.mxu0 0.0
        %1236 = vmatpush1.msra.mxu0 %v1218
        %1237 = vmatprep.subr.mxu0 0.0
        %1238 = vmatpush1.msra.mxu0 %v1219
        %1239 = vmatprep.subr.mxu0 0.0
        %1240 = vmatpush1.msra.mxu0 %v1220
        %1241 = vmatprep.subr.mxu0 0.0
        %1242 = vmatpush1.msra.mxu0 %v1221
        %1243 = vmatprep.subr.mxu0 0.0
        %1244 = vmatpush1.msra.mxu0 %v1222
        %1245 = vmatprep.subr.mxu0 0.0
        %1246 = vmatpush1.msra.mxu0 %v1223
        %1247 = vmatprep.subr.mxu0 0.0
        %1248 = vmatpush1.msra.mxu0 %v1224
        %1249 = vmatprep.subr.mxu0 0.0
        %1250 = vmatpush1.msra.mxu0 %v1225
        %1251 = vmatprep.subr.mxu0 0.0
        %1252 = vmatpush1.msra.mxu0 %v1226
        %1253 = vmatprep.subr.mxu0 0.0
        %1254 = vmatpush1.msra.mxu0 %v1227
        %1255 = vmatprep.subr.mxu0 0.0
        %1256 = vmatpush1.msra.mxu0 %v1228
        %1257 = vmatprep.subr.mxu0 0.0
        %1258 = vmatpush1.msra.mxu0 %v1229
        %1259 = vmatprep.subr.mxu0 0.0
        %1260 = vmatpush1.msra.mxu0 %v1230
        %1261 = vmatprep.subr.mxu0 0.0
        %1262 = vmatpush1.msra.mxu0 %v1231
        %1263 = vmatprep.subr.mxu0 0.0
        %1264 = vmatpush1.msra.mxu0 %v1232
        %1265 = vmatprep.subr.mxu0 0.0
        %1266 = vmatpush1.msra.mxu0 0.0
        %1267 = vmatprep.subr.mxu0 0.0
        %1268 = vmatpush1.msra.mxu0 0.0
        %1269 = vmatprep.subr.mxu0 0.0
        %1270 = vmatpush1.msra.mxu0 0.0
        %1271 = vmatprep.subr.mxu0 0.0
        %1272 = vmatpush1.msra.mxu0 0.0
        %1273 = vmatprep.subr.mxu0 0.0
        %1274 = vmatpush1.msra.mxu0 0.0
        %1275 = vmatprep.subr.mxu0 0.0
        %1276 = vmatpush1.msra.mxu0 0.0
        %1277 = vmatprep.subr.mxu0 0.0
        %1278 = vmatpush1.msra.mxu0 0.0
        %1279 = vmatprep.subr.mxu0 0.0
        %1280 = vmatpush1.msra.mxu0 0.0
        %1281 = vmatprep.subr.mxu0 0.0
        %1282 = vmatpush1.msra.mxu0 0.0
        %1283 = vmatprep.subr.mxu0 0.0
        %1284 = vmatpush1.msra.mxu0 0.0
        %1285 = vmatprep.subr.mxu0 0.0
        %1286 = vmatpush1.msra.mxu0 0.0
        %1287 = vmatprep.subr.mxu0 0.0
        %1288 = vmatpush1.msra.mxu0 0.0
        %1289 = vmatprep.subr.mxu0 0.0
        %1290 = vmatpush1.msra.mxu0 0.0
        %1291 = vmatprep.subr.mxu0 0.0
        %1292 = vmatpush1.msra.mxu0 0.0
        %1293 = vmatprep.subr.mxu0 0.0
        %1294 = vmatpush1.msra.mxu0 0.0
        %1295 = vmatprep.subr.mxu0 0.0
        %1296 = vmatpush1.msra.mxu0 0.0
        %1297 = vmatprep.mubr.f32.mxu0 0.0
        %1298 = vmatmul.mubr.f32.gmra.mrb[0].mxu0 %v1200
        %v1299 = vpop.f32.mrb[0].mxu0
        %v1300 = vadd.f32 0.0, %v1299
        %v1301 = vpop.f32.mrb[0].mxu0
        %1302 = vmatprep.mubr.f32.mxu0 0.0
        %1303 = vmatmul.mubr.f32.gmra.mrb[0].mxu0 %v1201
        %v1304 = vpop.f32.mrb[0].mxu0
        %v1305 = vadd.f32 0.0, %v1304
        %v1306 = vpop.f32.mrb[0].mxu0
        %1307 = vmatprep.mubr.f32.mxu0 0.0
        %1308 = vmatmul.mubr.f32.gmra.mrb[0].mxu0 %v1202
        %v1309 = vpop.f32.mrb[0].mxu0
        %v1310 = vadd.f32 0.0, %v1309
        %v1311 = vpop.f32.mrb[0].mxu0
        %1312 = vmatprep.mubr.f32.mxu0 0.0
        %1313 = vmatmul.mubr.f32.gmra.mrb[0].mxu0 %v1203
        %v1314 = vpop.f32.mrb[0].mxu0
        %v1315 = vadd.f32 0.0, %v1314
        %v1316 = vpop.f32.mrb[0].mxu0
        %1317 = vmatprep.mubr.f32.mxu0 0.0
        %1318 = vmatmul.mubr.f32.gmra.mrb[0].mxu0 %v1204
        %v1319 = vpop.f32.mrb[0].mxu0
        %v1320 = vadd.f32 0.0, %v1319
        %v1321 = vpop.f32.mrb[0].mxu0
        %1322 = vmatprep.mubr.f32.mxu0 0.0
        %1323 = vmatmul.mubr.f32.gmra.mrb[0].mxu0 %v1205
        %v1324 = vpop.f32.mrb[0].mxu0
        %v1325 = vadd.f32 0.0, %v1324
        %v1326 = vpop.f32.mrb[0].mxu0
        %1327 = vmatprep.mubr.f32.mxu0 0.0
        %1328 = vmatmul.mubr.f32.gmra.mrb[0].mxu0 %v1206
        %v1329 = vpop.f32.mrb[0].mxu0
        %v1330 = vadd.f32 0.0, %v1329
        %v1331 = vpop.f32.mrb[0].mxu0
        %1332 = vmatprep.mubr.f32.mxu0 0.0
        %1333 = vmatmul.mubr.f32.gmra.mrb[0].mxu0 %v1207
        %v1334 = vpop.f32.mrb[0].mxu0
        %v1335 = vadd.f32 0.0, %v1334
        %v1336 = vpop.f32.mrb[0].mxu0
        %1337 = vmatprep.mubr.f32.mxu0 0.0
        %1338 = vmatmul.mubr.f32.gmra.mrb[0].mxu0 %v1208
        %v1339 = vpop.f32.mrb[0].mxu0
        %v1340 = vadd.f32 0.0, %v1339
        %v1341 = vpop.f32.mrb[0].mxu0
        %1342 = vmatprep.mubr.f32.mxu0 0.0
        %1343 = vmatmul.mubr.f32.gmra.mrb[0].mxu0 %v1209
        %v1344 = vpop.f32.mrb[0].mxu0
        %v1345 = vadd.f32 0.0, %v1344
        %v1346 = vpop.f32.mrb[0].mxu0
        %1347 = vmatprep.mubr.f32.mxu0 0.0
        %1348 = vmatmul.mubr.f32.gmra.mrb[0].mxu0 %v1210
        %v1349 = vpop.f32.mrb[0].mxu0
        %v1350 = vadd.f32 0.0, %v1349
        %v1351 = vpop.f32.mrb[0].mxu0
        %1352 = vmatprep.mubr.f32.mxu0 0.0
        %1353 = vmatmul.mubr.f32.gmra.mrb[0].mxu0 %v1211
        %v1354 = vpop.f32.mrb[0].mxu0
        %v1355 = vadd.f32 0.0, %v1354
        %v1356 = vpop.f32.mrb[0].mxu0
        %1357 = vmatprep.mubr.f32.mxu0 0.0
        %1358 = vmatmul.mubr.f32.gmra.mrb[0].mxu0 %v1212
        %v1359 = vpop.f32.mrb[0].mxu0
        %v1360 = vadd.f32 0.0, %v1359
        %v1361 = vpop.f32.mrb[0].mxu0
        %1362 = vmatprep.mubr.f32.mxu0 0.0
        %1363 = vmatmul.mubr.f32.gmra.mrb[0].mxu0 %v1213
        %v1364 = vpop.f32.mrb[0].mxu0
        %v1365 = vadd.f32 0.0, %v1364
        %v1366 = vpop.f32.mrb[0].mxu0
        %1367 = vmatprep.mubr.f32.mxu0 0.0
        %1368 = vmatmul.mubr.f32.gmra.mrb[0].mxu0 %v1214
        %v1369 = vpop.f32.mrb[0].mxu0
        %v1370 = vadd.f32 0.0, %v1369
        %v1371 = vpop.f32.mrb[0].mxu0
        %1372 = vmatprep.mubr.f32.mxu0 0.0
        %1373 = vmatmul.mubr.f32.gmra.mrb[0].mxu0 %v1215
        %v1374 = vpop.f32.mrb[0].mxu0
        %v1375 = vadd.f32 0.0, %v1374
        %v1376 = vpop.f32.mrb[0].mxu0
        %1377 = vdwg.mxu0
        %v1378 = vadd.f32 %v1184, %v1300
        %v1379 = vadd.f32 %v1185, %v1305
        %v1380 = vadd.f32 %v1186, %v1310
        %v1381 = vadd.f32 %v1187, %v1315
        %v1382 = vadd.f32 %v1188, %v1320
        %v1383 = vadd.f32 %v1189, %v1325
        %v1384 = vadd.f32 %v1190, %v1330
        %v1385 = vadd.f32 %v1191, %v1335
        %v1386 = vadd.f32 %v1192, %v1340
        %v1387 = vadd.f32 %v1193, %v1345
        %v1388 = vadd.f32 %v1194, %v1350
        %v1389 = vadd.f32 %v1195, %v1355
        %v1390 = vadd.f32 %v1196, %v1360
        %v1391 = vadd.f32 %v1197, %v1365
        %v1392 = vadd.f32 %v1198, %v1370
        %v1393 = vadd.f32 %v1199, %v1375
        %v1394 = vld [vmem:[%s262 + $0x6] sm:$0xff]
        %v1395 = vld [vmem:[%s262 + $0xe] sm:$0xff]
        %v1396 = vld [vmem:[%s262 + $0x16] sm:$0xff]
        %v1397 = vld [vmem:[%s262 + $0x1e] sm:$0xff]
        %v1398 = vld [vmem:[%s262 + $0x26] sm:$0xff]
        %v1399 = vld [vmem:[%s262 + $0x2e] sm:$0xff]
        %v1400 = vld [vmem:[%s262 + $0x36] sm:$0xff]
        %v1401 = vld [vmem:[%s262 + $0x3e] sm:$0xff]
        %v1402 = vld [vmem:[%s262 + $0x46] sm:$0xff]
        %v1403 = vld [vmem:[%s262 + $0x4e] sm:$0xff]
        %v1404 = vld [vmem:[%s262 + $0x56] sm:$0xff]
        %v1405 = vld [vmem:[%s262 + $0x5e] sm:$0xff]
        %v1406 = vld [vmem:[%s262 + $0x66] sm:$0xff]
        %v1407 = vld [vmem:[%s262 + $0x6e] sm:$0xff]
        %v1408 = vld [vmem:[%s262 + $0x76] sm:$0xff]
        %v1409 = vld [vmem:[%s262 + $0x7e] sm:$0xff]
        %s1410 = scalar_lea.vmem %s2, 768
        %v1411 = vld [vmem:[%s1410] sm:$0xff]
        %v1412 = vld [vmem:[%s1410 + $0x8] sm:$0xff]
        %v1413 = vld [vmem:[%s1410 + $0x10] sm:$0xff]
        %v1414 = vld [vmem:[%s1410 + $0x18] sm:$0xff]
        %v1415 = vld [vmem:[%s1410 + $0x20] sm:$0xff]
        %v1416 = vld [vmem:[%s1410 + $0x28] sm:$0xff]
        %v1417 = vld [vmem:[%s1410 + $0x30] sm:$0xff]
        %v1418 = vld [vmem:[%s1410 + $0x38] sm:$0xff]
        %v1419 = vld [vmem:[%s1410 + $0x40] sm:$0xff]
        %v1420 = vld [vmem:[%s1410 + $0x48] sm:$0xff]
        %v1421 = vld [vmem:[%s1410 + $0x50] sm:$0xff]
        %v1422 = vld [vmem:[%s1410 + $0x58] sm:$0xff]
        %v1423 = vld [vmem:[%s1410 + $0x60] sm:$0xff]
        %v1424 = vld [vmem:[%s1410 + $0x68] sm:$0xff]
        %v1425 = vld [vmem:[%s1410 + $0x70] sm:$0xff]
        %v1426 = vld [vmem:[%s1410 + $0x78] sm:$0xff]
        %1427 = vmatprep.subr.mxu0 0.0
        %1428 = vmatpush1.msra.mxu0 %v1411
        %1429 = vmatprep.subr.mxu0 0.0
        %1430 = vmatpush1.msra.mxu0 %v1412
        %1431 = vmatprep.subr.mxu0 0.0
        %1432 = vmatpush1.msra.mxu0 %v1413
        %1433 = vmatprep.subr.mxu0 0.0
        %1434 = vmatpush1.msra.mxu0 %v1414
        %1435 = vmatprep.subr.mxu0 0.0
        %1436 = vmatpush1.msra.mxu0 %v1415
        %1437 = vmatprep.subr.mxu0 0.0
        %1438 = vmatpush1.msra.mxu0 %v1416
        %1439 = vmatprep.subr.mxu0 0.0
        %1440 = vmatpush1.msra.mxu0 %v1417
        %1441 = vmatprep.subr.mxu0 0.0
        %1442 = vmatpush1.msra.mxu0 %v1418
        %1443 = vmatprep.subr.mxu0 0.0
        %1444 = vmatpush1.msra.mxu0 %v1419
        %1445 = vmatprep.subr.mxu0 0.0
        %1446 = vmatpush1.msra.mxu0 %v1420
        %1447 = vmatprep.subr.mxu0 0.0
        %1448 = vmatpush1.msra.mxu0 %v1421
        %1449 = vmatprep.subr.mxu0 0.0
        %1450 = vmatpush1.msra.mxu0 %v1422
        %1451 = vmatprep.subr.mxu0 0.0
        %1452 = vmatpush1.msra.mxu0 %v1423
        %1453 = vmatprep.subr.mxu0 0.0
        %1454 = vmatpush1.msra.mxu0 %v1424
        %1455 = vmatprep.subr.mxu0 0.0
        %1456 = vmatpush1.msra.mxu0 %v1425
        %1457 = vmatprep.subr.mxu0 0.0
        %1458 = vmatpush1.msra.mxu0 %v1426
        %1459 = vmatprep.subr.mxu0 0.0
        %1460 = vmatpush1.msra.mxu0 0.0
        %1461 = vmatprep.subr.mxu0 0.0
        %1462 = vmatpush1.msra.mxu0 0.0
        %1463 = vmatprep.subr.mxu0 0.0
        %1464 = vmatpush1.msra.mxu0 0.0
        %1465 = vmatprep.subr.mxu0 0.0
        %1466 = vmatpush1.msra.mxu0 0.0
        %1467 = vmatprep.subr.mxu0 0.0
        %1468 = vmatpush1.msra.mxu0 0.0
        %1469 = vmatprep.subr.mxu0 0.0
        %1470 = vmatpush1.msra.mxu0 0.0
        %1471 = vmatprep.subr.mxu0 0.0
        %1472 = vmatpush1.msra.mxu0 0.0
        %1473 = vmatprep.subr.mxu0 0.0
        %1474 = vmatpush1.msra.mxu0 0.0
        %1475 = vmatprep.subr.mxu0 0.0
        %1476 = vmatpush1.msra.mxu0 0.0
        %1477 = vmatprep.subr.mxu0 0.0
        %1478 = vmatpush1.msra.mxu0 0.0
        %1479 = vmatprep.subr.mxu0 0.0
        %1480 = vmatpush1.msra.mxu0 0.0
        %1481 = vmatprep.subr.mxu0 0.0
        %1482 = vmatpush1.msra.mxu0 0.0
        %1483 = vmatprep.subr.mxu0 0.0
        %1484 = vmatpush1.msra.mxu0 0.0
        %1485 = vmatprep.subr.mxu0 0.0
        %1486 = vmatpush1.msra.mxu0 0.0
        %1487 = vmatprep.subr.mxu0 0.0
        %1488 = vmatpush1.msra.mxu0 0.0
        %1489 = vmatprep.subr.mxu0 0.0
        %1490 = vmatpush1.msra.mxu0 0.0
        %1491 = vmatprep.mubr.f32.mxu0 0.0
        %1492 = vmatmul.mubr.f32.gmra.mrb[0].mxu0 %v1394
        %v1493 = vpop.f32.mrb[0].mxu0
        %v1494 = vadd.f32 0.0, %v1493
        %v1495 = vpop.f32.mrb[0].mxu0
        %1496 = vmatprep.mubr.f32.mxu0 0.0
        %1497 = vmatmul.mubr.f32.gmra.mrb[0].mxu0 %v1395
        %v1498 = vpop.f32.mrb[0].mxu0
        %v1499 = vadd.f32 0.0, %v1498
        %v1500 = vpop.f32.mrb[0].mxu0
        %1501 = vmatprep.mubr.f32.mxu0 0.0
        %1502 = vmatmul.mubr.f32.gmra.mrb[0].mxu0 %v1396
        %v1503 = vpop.f32.mrb[0].mxu0
        %v1504 = vadd.f32 0.0, %v1503
        %v1505 = vpop.f32.mrb[0].mxu0
        %1506 = vmatprep.mubr.f32.mxu0 0.0
        %1507 = vmatmul.mubr.f32.gmra.mrb[0].mxu0 %v1397
        %v1508 = vpop.f32.mrb[0].mxu0
        %v1509 = vadd.f32 0.0, %v1508
        %v1510 = vpop.f32.mrb[0].mxu0
        %1511 = vmatprep.mubr.f32.mxu0 0.0
        %1512 = vmatmul.mubr.f32.gmra.mrb[0].mxu0 %v1398
        %v1513 = vpop.f32.mrb[0].mxu0
        %v1514 = vadd.f32 0.0, %v1513
        %v1515 = vpop.f32.mrb[0].mxu0
        %1516 = vmatprep.mubr.f32.mxu0 0.0
        %1517 = vmatmul.mubr.f32.gmra.mrb[0].mxu0 %v1399
        %v1518 = vpop.f32.mrb[0].mxu0
        %v1519 = vadd.f32 0.0, %v1518
        %v1520 = vpop.f32.mrb[0].mxu0
        %1521 = vmatprep.mubr.f32.mxu0 0.0
        %1522 = vmatmul.mubr.f32.gmra.mrb[0].mxu0 %v1400
        %v1523 = vpop.f32.mrb[0].mxu0
        %v1524 = vadd.f32 0.0, %v1523
        %v1525 = vpop.f32.mrb[0].mxu0
        %1526 = vmatprep.mubr.f32.mxu0 0.0
        %1527 = vmatmul.mubr.f32.gmra.mrb[0].mxu0 %v1401
        %v1528 = vpop.f32.mrb[0].mxu0
        %v1529 = vadd.f32 0.0, %v1528
        %v1530 = vpop.f32.mrb[0].mxu0
        %1531 = vmatprep.mubr.f32.mxu0 0.0
        %1532 = vmatmul.mubr.f32.gmra.mrb[0].mxu0 %v1402
        %v1533 = vpop.f32.mrb[0].mxu0
        %v1534 = vadd.f32 0.0, %v1533
        %v1535 = vpop.f32.mrb[0].mxu0
        %1536 = vmatprep.mubr.f32.mxu0 0.0
        %1537 = vmatmul.mubr.f32.gmra.mrb[0].mxu0 %v1403
        %v1538 = vpop.f32.mrb[0].mxu0
        %v1539 = vadd.f32 0.0, %v1538
        %v1540 = vpop.f32.mrb[0].mxu0
        %1541 = vmatprep.mubr.f32.mxu0 0.0
        %1542 = vmatmul.mubr.f32.gmra.mrb[0].mxu0 %v1404
        %v1543 = vpop.f32.mrb[0].mxu0
        %v1544 = vadd.f32 0.0, %v1543
        %v1545 = vpop.f32.mrb[0].mxu0
        %1546 = vmatprep.mubr.f32.mxu0 0.0
        %1547 = vmatmul.mubr.f32.gmra.mrb[0].mxu0 %v1405
        %v1548 = vpop.f32.mrb[0].mxu0
        %v1549 = vadd.f32 0.0, %v1548
        %v1550 = vpop.f32.mrb[0].mxu0
        %1551 = vmatprep.mubr.f32.mxu0 0.0
        %1552 = vmatmul.mubr.f32.gmra.mrb[0].mxu0 %v1406
        %v1553 = vpop.f32.mrb[0].mxu0
        %v1554 = vadd.f32 0.0, %v1553
        %v1555 = vpop.f32.mrb[0].mxu0
        %1556 = vmatprep.mubr.f32.mxu0 0.0
        %1557 = vmatmul.mubr.f32.gmra.mrb[0].mxu0 %v1407
        %v1558 = vpop.f32.mrb[0].mxu0
        %v1559 = vadd.f32 0.0, %v1558
        %v1560 = vpop.f32.mrb[0].mxu0
        %1561 = vmatprep.mubr.f32.mxu0 0.0
        %1562 = vmatmul.mubr.f32.gmra.mrb[0].mxu0 %v1408
        %v1563 = vpop.f32.mrb[0].mxu0
        %v1564 = vadd.f32 0.0, %v1563
        %v1565 = vpop.f32.mrb[0].mxu0
        %1566 = vmatprep.mubr.f32.mxu0 0.0
        %1567 = vmatmul.mubr.f32.gmra.mrb[0].mxu0 %v1409
        %v1568 = vpop.f32.mrb[0].mxu0
        %v1569 = vadd.f32 0.0, %v1568
        %v1570 = vpop.f32.mrb[0].mxu0
        %1571 = vdwg.mxu0
        %v1572 = vadd.f32 %v1378, %v1494
        %v1573 = vadd.f32 %v1379, %v1499
        %v1574 = vadd.f32 %v1380, %v1504
        %v1575 = vadd.f32 %v1381, %v1509
        %v1576 = vadd.f32 %v1382, %v1514
        %v1577 = vadd.f32 %v1383, %v1519
        %v1578 = vadd.f32 %v1384, %v1524
        %v1579 = vadd.f32 %v1385, %v1529
        %v1580 = vadd.f32 %v1386, %v1534
        %v1581 = vadd.f32 %v1387, %v1539
        %v1582 = vadd.f32 %v1388, %v1544
        %v1583 = vadd.f32 %v1389, %v1549
        %v1584 = vadd.f32 %v1390, %v1554
        %v1585 = vadd.f32 %v1391, %v1559
        %v1586 = vadd.f32 %v1392, %v1564
        %v1587 = vadd.f32 %v1393, %v1569
        %v1588 = vld [vmem:[%s3] sm:$0x1]
        %v1590 = vlaneseq
        %v1591 = vshrl.u32 %v1590, 7
        %v1592 = vsub.s32 0, %v1591
        %v1593 = vrot.slane %v1588, %v1592
        %v1595 = vadd.f32 %v1572, %v1593
        %v1596 = vadd.f32 %v1573, %v1593
        %v1597 = vadd.f32 %v1574, %v1593
        %v1598 = vadd.f32 %v1575, %v1593
        %v1599 = vadd.f32 %v1576, %v1593
        %v1600 = vadd.f32 %v1577, %v1593
        %v1601 = vadd.f32 %v1578, %v1593
        %v1602 = vadd.f32 %v1579, %v1593
        %v1603 = vadd.f32 %v1580, %v1593
        %v1604 = vadd.f32 %v1581, %v1593
        %v1605 = vadd.f32 %v1582, %v1593
        %v1606 = vadd.f32 %v1583, %v1593
        %v1607 = vadd.f32 %v1584, %v1593
        %v1608 = vadd.f32 %v1585, %v1593
        %v1609 = vadd.f32 %v1586, %v1593
        %v1610 = vadd.f32 %v1587, %v1593
        %vm1611 = vcmp.ge.f32.partialorder %v1595, 0.0
        %vm1612 = vcmp.ge.f32.partialorder %v1596, 0.0
        %vm1613 = vcmp.ge.f32.partialorder %v1597, 0.0
        %vm1614 = vcmp.ge.f32.partialorder %v1598, 0.0
        %vm1615 = vcmp.ge.f32.partialorder %v1599, 0.0
        %vm1616 = vcmp.ge.f32.partialorder %v1600, 0.0
        %vm1617 = vcmp.ge.f32.partialorder %v1601, 0.0
        %vm1618 = vcmp.ge.f32.partialorder %v1602, 0.0
        %vm1619 = vcmp.ge.f32.partialorder %v1603, 0.0
        %vm1620 = vcmp.ge.f32.partialorder %v1604, 0.0
        %vm1621 = vcmp.ge.f32.partialorder %v1605, 0.0
        %vm1622 = vcmp.ge.f32.partialorder %v1606, 0.0
        %vm1623 = vcmp.ge.f32.partialorder %v1607, 0.0
        %vm1624 = vcmp.ge.f32.partialorder %v1608, 0.0
        %vm1625 = vcmp.ge.f32.partialorder %v1609, 0.0
        %vm1626 = vcmp.ge.f32.partialorder %v1610, 0.0
        %v1627 = vmul.f32 %v1595, 0.2
        %v1628 = vmul.f32 %v1596, 0.2
        %v1629 = vmul.f32 %v1597, 0.2
        %v1630 = vmul.f32 %v1598, 0.2
        %v1631 = vmul.f32 %v1599, 0.2
        %v1632 = vmul.f32 %v1600, 0.2
        %v1633 = vmul.f32 %v1601, 0.2
        %v1634 = vmul.f32 %v1602, 0.2
        %v1635 = vmul.f32 %v1603, 0.2
        %v1636 = vmul.f32 %v1604, 0.2
        %v1637 = vmul.f32 %v1605, 0.2
        %v1638 = vmul.f32 %v1606, 0.2
        %v1639 = vmul.f32 %v1607, 0.2
        %v1640 = vmul.f32 %v1608, 0.2
        %v1641 = vmul.f32 %v1609, 0.2
        %v1642 = vmul.f32 %v1610, 0.2
        %v1643 = vsel %vm1611, %v1595, %v1627
        %v1644 = vsel %vm1612, %v1596, %v1628
        %v1645 = vsel %vm1613, %v1597, %v1629
        %v1646 = vsel %vm1614, %v1598, %v1630
        %v1647 = vsel %vm1615, %v1599, %v1631
        %v1648 = vsel %vm1616, %v1600, %v1632
        %v1649 = vsel %vm1617, %v1601, %v1633
        %v1650 = vsel %vm1618, %v1602, %v1634
        %v1651 = vsel %vm1619, %v1603, %v1635
        %v1652 = vsel %vm1620, %v1604, %v1636
        %v1653 = vsel %vm1621, %v1605, %v1637
        %v1654 = vsel %vm1622, %v1606, %v1638
        %v1655 = vsel %vm1623, %v1607, %v1639
        %v1656 = vsel %vm1624, %v1608, %v1640
        %v1657 = vsel %vm1625, %v1609, %v1641
        %v1658 = vsel %vm1626, %v1610, %v1642
        %v1659 = vld [vmem:[%s4] sm:$0x1]
        %v1660 = vlaneseq
        %v1661 = vshrl.u32 %v1660, 7
        %v1662 = vsub.s32 0, %v1661
        %v1663 = vrot.slane %v1659, %v1662
        %v1664 = vmul.f32 %v1663, %v1643
        %v1665 = vmul.f32 %v1663, %v1644
        %v1666 = vmul.f32 %v1663, %v1645
        %v1667 = vmul.f32 %v1663, %v1646
        %v1668 = vmul.f32 %v1663, %v1647
        %v1669 = vmul.f32 %v1663, %v1648
        %v1670 = vmul.f32 %v1663, %v1649
        %v1671 = vmul.f32 %v1663, %v1650
        %v1672 = vmul.f32 %v1663, %v1651
        %v1673 = vmul.f32 %v1663, %v1652
        %v1674 = vmul.f32 %v1663, %v1653
        %v1675 = vmul.f32 %v1663, %v1654
        %v1676 = vmul.f32 %v1663, %v1655
        %v1677 = vmul.f32 %v1663, %v1656
        %v1678 = vmul.f32 %v1663, %v1657
        %v1679 = vmul.f32 %v1663, %v1658
        %v1680 = vld [vmem:[%s4 + $0x1] sm:$0x1]
        %v1681 = vld [vmem:[%s226] sm:$0xff]
        %v1682 = vld [vmem:[%s226 + $0x8] sm:$0xff]
        %v1683 = vld [vmem:[%s226 + $0x10] sm:$0xff]
        %v1684 = vld [vmem:[%s226 + $0x18] sm:$0xff]
        %v1685 = vld [vmem:[%s226 + $0x20] sm:$0xff]
        %v1686 = vld [vmem:[%s226 + $0x28] sm:$0xff]
        %v1687 = vld [vmem:[%s226 + $0x30] sm:$0xff]
        %v1688 = vld [vmem:[%s226 + $0x38] sm:$0xff]
        %v1689 = vld [vmem:[%s226 + $0x40] sm:$0xff]
        %v1690 = vld [vmem:[%s226 + $0x48] sm:$0xff]
        %v1691 = vld [vmem:[%s226 + $0x50] sm:$0xff]
        %v1692 = vld [vmem:[%s226 + $0x58] sm:$0xff]
        %v1693 = vld [vmem:[%s226 + $0x60] sm:$0xff]
        %v1694 = vld [vmem:[%s226 + $0x68] sm:$0xff]
        %v1695 = vld [vmem:[%s226 + $0x70] sm:$0xff]
        %v1696 = vld [vmem:[%s226 + $0x78] sm:$0xff]
        %v1697 = vlaneseq
        %v1698 = vshrl.u32 %v1697, 7
        %v1699 = vsub.s32 0, %v1698
        %v1700 = vrot.slane %v1680, %v1699
        %v1701 = vmul.f32 %v1700, %v1681
        %v1702 = vmul.f32 %v1700, %v1682
        %v1703 = vmul.f32 %v1700, %v1683
        %v1704 = vmul.f32 %v1700, %v1684
        %v1705 = vmul.f32 %v1700, %v1685
        %v1706 = vmul.f32 %v1700, %v1686
        %v1707 = vmul.f32 %v1700, %v1687
        %v1708 = vmul.f32 %v1700, %v1688
        %v1709 = vmul.f32 %v1700, %v1689
        %v1710 = vmul.f32 %v1700, %v1690
        %v1711 = vmul.f32 %v1700, %v1691
        %v1712 = vmul.f32 %v1700, %v1692
        %v1713 = vmul.f32 %v1700, %v1693
        %v1714 = vmul.f32 %v1700, %v1694
        %v1715 = vmul.f32 %v1700, %v1695
        %v1716 = vmul.f32 %v1700, %v1696
        %v1717 = vadd.f32 %v1664, %v1701
        %v1718 = vadd.f32 %v1665, %v1702
        %v1719 = vadd.f32 %v1666, %v1703
        %v1720 = vadd.f32 %v1667, %v1704
        %v1721 = vadd.f32 %v1668, %v1705
        %v1722 = vadd.f32 %v1669, %v1706
        %v1723 = vadd.f32 %v1670, %v1707
        %v1724 = vadd.f32 %v1671, %v1708
        %v1725 = vadd.f32 %v1672, %v1709
        %v1726 = vadd.f32 %v1673, %v1710
        %v1727 = vadd.f32 %v1674, %v1711
        %v1728 = vadd.f32 %v1675, %v1712
        %v1729 = vadd.f32 %v1676, %v1713
        %v1730 = vadd.f32 %v1677, %v1714
        %v1731 = vadd.f32 %v1678, %v1715
        %v1732 = vadd.f32 %v1679, %v1716
        %1733 = vst [vmem:[%s257] sm:$0xff] %v1717
        %1734 = vst [vmem:[%s257 + $0x8] sm:$0xff] %v1718
        %1735 = vst [vmem:[%s257 + $0x10] sm:$0xff] %v1719
        %1736 = vst [vmem:[%s257 + $0x18] sm:$0xff] %v1720
        %1737 = vst [vmem:[%s257 + $0x20] sm:$0xff] %v1721
        %1738 = vst [vmem:[%s257 + $0x28] sm:$0xff] %v1722
        %1739 = vst [vmem:[%s257 + $0x30] sm:$0xff] %v1723
        %1740 = vst [vmem:[%s257 + $0x38] sm:$0xff] %v1724
        %1741 = vst [vmem:[%s257 + $0x40] sm:$0xff] %v1725
        %1742 = vst [vmem:[%s257 + $0x48] sm:$0xff] %v1726
        %1743 = vst [vmem:[%s257 + $0x50] sm:$0xff] %v1727
        %1744 = vst [vmem:[%s257 + $0x58] sm:$0xff] %v1728
        %1745 = vst [vmem:[%s257 + $0x60] sm:$0xff] %v1729
        %1746 = vst [vmem:[%s257 + $0x68] sm:$0xff] %v1730
        %1747 = vst [vmem:[%s257 + $0x70] sm:$0xff] %v1731
        %1748 = vst [vmem:[%s257 + $0x78] sm:$0xff] %v1732
        %s1749 = sand.u32 %s145, 1
        %s1750 = scalar_lea.sflag [#allocation4], %s1749
        %s1751 = sand.u32 %s145, 1
        %s1752 = smul.addr %s1751, 128
        %s1753 = scalar_lea.vmem [#allocation5], %s1752
        // Predicated region
        $region45: #{tpu_custom_call.1} parent=39 // pred_check
          %p1754 = pneg %p155
        $region46: #{tpu_custom_call.1} parent=39 // pred_check_branch
          %1756 = sbr.rel (%p1754) target = $region48
        $region47: #{tpu_custom_call.1} parent=39 // pred_region
          %s1758 = ssub.s32 2048, 2048
          %1759 = vsyncadd %s1750, %s1758
          %s1760 = smul.addr %s22, 16
          %s1761 = smul.addr %s1760, 128
          %s1762 = scalar_lea.hbm %s5, %s1761
          %s1763 = sshll.u32 %s1753, 4
          %s1764 = int_to_ptr.vmem [resolvable:$true] %s1763
          %1769 = dma.vmem_to_hbm [thread:$0]  %s1764, 2048, %s1762, %s1750, 128, 128, 8
        $region48: #{tpu_custom_call.1} parent=39 // pred_fallthru
          _
      $region40: #{tpu_custom_call.1} parent=5 // pred_fallthru
        _
      %p1770 = scmp.le.s32.totalorder 2, %s17
      // Predicated region
      $region49: #{tpu_custom_call.1} parent=5 // pred_check
        %p1771 = pneg %p1770
      $region50: #{tpu_custom_call.1} parent=5 // pred_check_branch
        %1773 = sbr.rel (%p1771) target = $region52
      $region51: #{tpu_custom_call.1} parent=5 // pred_region
        %s1774 = ssub.s32 %s17, 2
        // Predicated region
        $region53: #{tpu_custom_call.1} parent=51 // pred_check
          %p1775 = pneg %p161
        $region54: #{tpu_custom_call.1} parent=51 // pred_check_branch
          %1777 = sbr.rel (%p1775) target = $region56
        $region55: #{tpu_custom_call.1} parent=51 // pred_region
          %s1778 = sand.u32 %s146, 1
          %s1779 = scalar_lea.sflag [#allocation4], %s1778
          %s1780 = sand.u32 %s146, 1
          %s1781 = smul.addr %s1780, 128
          %s1782 = scalar_lea.vmem [#allocation5], %s1781
          %1783 = dma.done %s1779, 2048
        $region56: #{tpu_custom_call.1} parent=51 // pred_fallthru
          _
      $region52: #{tpu_custom_call.1} parent=5 // pred_fallthru
        _
    $region6: #{tpu_custom_call.1} parent=1 // loop_footer
      %s21 = sadd.s32 1, %s17
    $region7: #{tpu_custom_call.1} parent=1 // loop_footer_branch
      %16 = sbr.rel target = $region3
    $region8: #{tpu_custom_call.1} parent=1 // loop_exit
      _
    %1784 = vsyncpa [#allocation3], 1
    %s1785 = scalar_lea.sflag [#allocation3], 1
    %1786 = vsyncpa %s1785, 1
    %1787 = vsyncpa [#allocation4], 1
    %s1788 = scalar_lea.sflag [#allocation4], 1
    %1789 = vsyncpa %s1788, 1

</llo_original>
